<compile_context>
chip_gen: v5e
topology: v5e:2x2
jax: 0.10.0
libtpu: 0.0.40
codegen_flags: <defaults>
</compile_context>

<pallas_src>
import functools

import jax
import jax.numpy as jnp
from jax.experimental import pallas as pl
from jax.experimental.pallas import tpu as pltpu

LANE = 128


def _tcl_kernel(x_ref, wb_ref, bb_ref, wh_ref, bh_ref, wd2_ref, bd2_ref,
                wdd_ref, bdd_ref,
                feat_out, y_out, ysm_out, d_out,
                *, inv_hw, classes):
    # --- frozen-backbone stand-in: global average pool over spatial (sublanes)
    pooled = jnp.sum(x_ref[...], axis=1) * inv_hw                   # (TB, C) f32

    # --- x = relu(bottleneck(x)); lanes padded to 128, padded lanes stay 0 ---
    xb = jnp.dot(pooled.astype(jnp.bfloat16), wb_ref[...],
                 preferred_element_type=jnp.float32) + bb_ref[...]
    xb = jnp.maximum(xb, 0.0)                                       # (TB, 128)
    feat_out[...] = xb.astype(feat_out.dtype)

    # --- fused classifier + dfc1 matmul: (TB,128) @ (128,256) ---
    head = jnp.dot(xb.astype(jnp.bfloat16), wh_ref[...],
                   preferred_element_type=jnp.float32) + bh_ref[...]
    y = head[:, :LANE]                                              # logits (lane-padded)
    h1 = jnp.maximum(head[:, LANE:], 0.0)                           # relu(dfc1); drop1 = id
    y_out[...] = y.astype(y_out.dtype)

    # --- softmax over the real `classes` lanes only (padded lanes -> 0) ---
    lane_idx = jax.lax.broadcasted_iota(jnp.int32, y.shape, 1)
    y_m = jnp.where(lane_idx < classes, y, -jnp.inf)
    m = jnp.max(y_m, axis=-1, keepdims=True)
    e = jnp.exp(y_m - m)
    denom = jnp.sum(e, axis=-1, keepdims=True)
    ysm_out[...] = (e * pl.reciprocal(denom, approx=True)).astype(ysm_out.dtype)

    # --- dfc2 + relu (drop2 = id) ---
    h2 = jnp.dot(h1.astype(jnp.bfloat16), wd2_ref[...],
                 preferred_element_type=jnp.float32) + bd2_ref[...]
    h2 = jnp.maximum(h2, 0.0)                                       # (TB, 128)

    # --- discriminator (out_features=1): VPU multiply + lane reduce, sigmoid ---
    dd = jnp.sum(h2 * wdd_ref[...], axis=-1, keepdims=True) + bdd_ref[...]
    d = pl.reciprocal(1.0 + jnp.exp(-dd), approx=True)              # sigmoid
    d_out[...] = jnp.broadcast_to(d, d_out.shape).astype(d_out.dtype)


def _pad2(a, rows, cols):
    r, c = a.shape
    return jnp.pad(a, ((0, rows - r), (0, cols - c)))


def init_params(key, feature_dim, bottleneck, classes, hidden):
    ks = jax.random.split(key, 5)
    # Matches the module's __init__ initializers (normal std / constant bias);
    # all Linear weights stored transposed: (in_features, out_features).
    return dict(
        wb=0.005 * jax.random.normal(ks[0], (feature_dim, bottleneck), jnp.float32),
        bb=jnp.full((1, bottleneck), 0.1, jnp.float32),
        wc=0.01 * jax.random.normal(ks[1], (bottleneck, classes), jnp.float32),
        bc=jnp.zeros((1, classes), jnp.float32),
        wd1=0.01 * jax.random.normal(ks[2], (bottleneck, hidden), jnp.float32),
        bd1=jnp.zeros((1, hidden), jnp.float32),
        wd2=0.01 * jax.random.normal(ks[3], (hidden, hidden), jnp.float32),
        bd2=jnp.zeros((1, hidden), jnp.float32),
        wdd=0.3 * jax.random.normal(ks[4], (hidden, 1), jnp.float32),
        bdd=jnp.zeros((1, 1), jnp.float32),
    )


def tcl_net_forward(x_nchw, params):
    """Returns (x, y, y_softmax, d) — the `alpha != None` branch of TCL_Net."""
    B, C, H, W = x_nchw.shape
    HW = H * W
    bottleneck = params["wb"].shape[1]
    classes = params["wc"].shape[1]
    hidden = params["wd1"].shape[1]
    assert bottleneck <= LANE and classes <= LANE and hidden <= LANE, (
        "head dims are padded to a single 128-lane tile")

    # NCHW -> (B, HW, C): channels on lanes, spatial on sublanes (wrapper plumbing).
    x_hwc = jnp.transpose(x_nchw.reshape(B, C, HW), (0, 2, 1)).astype(jnp.float32)

    # ---- batch tiling: sublane-aligned, VMEM-budgeted power-of-two tiles ----
    itemsize = 4
    x_budget = 16 * 1024 * 1024                     # budget for double-buffered x tile
    b_pad = ((B + 7) // 8) * 8
    tb = 8
    while tb < 128 and tb < b_pad and 2 * (tb * 2) * HW * C * itemsize <= x_budget:
        tb *= 2
    b_pad = ((b_pad + tb - 1) // tb) * tb
    grid = (b_pad // tb,)
    if b_pad != B:
        x_hwc = jnp.pad(x_hwc, ((0, b_pad - B), (0, 0), (0, 0)))

    # ---- pad / fuse / cast parameters (bf16 MXU operands, f32 biases) ----
    wb = _pad2(params["wb"], C, LANE).astype(jnp.bfloat16)              # (C, 128)
    bb = _pad2(params["bb"], 1, LANE)                                   # (1, 128)
    w_head = jnp.concatenate(
        [_pad2(params["wc"], LANE, LANE), _pad2(params["wd1"], LANE, LANE)],
        axis=1).astype(jnp.bfloat16)                                    # (128, 256)
    b_head = jnp.concatenate(
        [_pad2(params["bc"], 1, LANE), _pad2(params["bd1"], 1, LANE)], axis=1)
    wd2 = _pad2(params["wd2"], LANE, LANE).astype(jnp.bfloat16)         # (128, 128)
    bd2 = _pad2(params["bd2"], 1, LANE)                                 # (1, 128)
    wdd = _pad2(params["wdd"].T, 1, LANE)                               # (1, 128) f32
    bdd = params["bdd"].reshape(1, 1).astype(jnp.float32)               # (1, 1)

    kernel = functools.partial(_tcl_kernel, inv_hw=1.0 / HW, classes=classes)

    in_specs = [
        pl.BlockSpec((tb, HW, C), lambda i: (i, 0, 0)),       # x: streamed per tile
        pl.BlockSpec((C, LANE), lambda i: (0, 0)),            # weights: VMEM-resident
        pl.BlockSpec((1, LANE), lambda i: (0, 0)),
        pl.BlockSpec((LANE, 2 * LANE), lambda i: (0, 0)),
        pl.BlockSpec((1, 2 * LANE), lambda i: (0, 0)),
        pl.BlockSpec((LANE, LANE), lambda i: (0, 0)),
        pl.BlockSpec((1, LANE), lambda i: (0, 0)),
        pl.BlockSpec((1, LANE), lambda i: (0, 0)),
        pl.BlockSpec((1, 1), lambda i: (0, 0)),
    ]
    out_specs = tuple(pl.BlockSpec((tb, LANE), lambda i: (i, 0)) for _ in range(4))
    out_shape = tuple(jax.ShapeDtypeStruct((b_pad, LANE), jnp.float32)
                      for _ in range(4))

    # rough roofline hint for XLA's scheduler
    w_bytes = ((wb.size + w_head.size + wd2.size) * 2
               + (bb.size + b_head.size + bd2.size + wdd.size + 1) * 4)
    cost = pl.CostEstimate(
        flops=int(b_pad * HW * C
                  + 2 * b_pad * (C * LANE + LANE * 2 * LANE + LANE * LANE)
                  + 4 * b_pad * LANE),
        transcendentals=int(b_pad * (LANE + 1)),
        bytes_accessed=int(x_hwc.size * 4 + w_bytes + 4 * b_pad * LANE * 4),
    )

    x_tile_bytes = 2 * tb * HW * C * itemsize          # double-buffered input
    out_tile_bytes = 2 * 4 * tb * LANE * 4             # double-buffered outputs
    vmem_limit = int(min(max(int(1.5 * (x_tile_bytes + out_tile_bytes + w_bytes)),
                             16 * 1024 * 1024), 48 * 1024 * 1024))

    feat_p, y_p, ysm_p, d_p = pl.pallas_call(
        kernel,
        out_shape=out_shape,
        grid=grid,
        in_specs=in_specs,
        out_specs=out_specs,
        compiler_params=pltpu.CompilerParams(
            dimension_semantics=("parallel",),
            vmem_limit_bytes=vmem_limit),
        cost_estimate=cost,
    )(x_hwc, wb, bb, w_head, b_head, wd2, bd2, wdd, bdd)

    # slice lane / batch padding off
    return (feat_p[:B, :bottleneck],
            y_p[:B, :classes],
            ysm_p[:B, :classes],
            d_p[:B, :1])


def _ref_forward(x_nchw, params):
    """Pure-JAX f32 reference of the same forward (for correctness checks)."""
    B, C, H, W = x_nchw.shape
    pooled = jnp.mean(x_nchw.reshape(B, C, H * W).astype(jnp.float32), axis=-1)
    xb = jnp.maximum(pooled @ params["wb"] + params["bb"], 0.0)
    y = xb @ params["wc"] + params["bc"]
    ysm = jax.nn.softmax(y, axis=-1)
    h1 = jnp.maximum(xb @ params["wd1"] + params["bd1"], 0.0)
    h2 = jnp.maximum(h1 @ params["wd2"] + params["bd2"], 0.0)
    d = jax.nn.sigmoid(h2 @ params["wdd"] + params["bdd"])
    return xb, y, ysm, d


if __name__ == "__main__":
    # Small, self-consistent shapes: batch=2, feature_dim=64 (backbone channels),
    # spatial=16x16, bottleneck=32, classes=8, hidden=32.
    B, FEAT_DIM, H, W = 2, 64, 16, 16
    BOTTLENECK, CLASSES, HIDDEN = 32, 8, 32

    key = jax.random.PRNGKey(0)
    k_x, k_p = jax.random.split(key)
    x = jax.random.normal(k_x, (B, FEAT_DIM, H, W), jnp.float32)   # NCHW
    params = init_params(k_p, FEAT_DIM, BOTTLENECK, CLASSES, HIDDEN)

    feats, logits, probs, d = jax.block_until_ready(tcl_net_forward(x, params))

    assert feats.shape == (B, BOTTLENECK)
    assert logits.shape == (B, CLASSES)
    assert probs.shape == (B, CLASSES)
    assert d.shape == (B, 1)

    # sanity: softmax rows sum to ~1, sigmoid in (0, 1) (approx-reciprocal tolerance)
    assert bool(jnp.all(jnp.abs(jnp.sum(probs, axis=-1) - 1.0) < 1e-2))
    assert bool(jnp.all((d > 0.0) & (d < 1.0 + 1e-3)))

    # correctness vs pure-JAX f32 reference (bf16 MXU + approx-EUP tolerance)
    rf, ry, rp, rd = _ref_forward(x, params)
    assert bool(jnp.allclose(feats, rf, atol=2e-2, rtol=2e-2))
    assert bool(jnp.allclose(logits, ry, atol=2e-2, rtol=2e-2))
    assert bool(jnp.allclose(probs, rp, atol=2e-2, rtol=2e-2))
    assert bool(jnp.allclose(d, rd, atol=2e-2, rtol=2e-2))

    print("KERNEL_OK")
</pallas_src>

<mosaic_0001>
module attributes {stable_mosaic.version = 11 : i64} {
  func.func @_tcl_kernel(%arg0: i32, %arg1: memref<8x256x64xf32, #tpu.memory_space<vmem>>, %arg2: memref<64x128xbf16, #tpu.memory_space<vmem>>, %arg3: memref<1x128xf32, #tpu.memory_space<vmem>>, %arg4: memref<128x256xbf16, #tpu.memory_space<vmem>>, %arg5: memref<1x256xf32, #tpu.memory_space<vmem>>, %arg6: memref<128x128xbf16, #tpu.memory_space<vmem>>, %arg7: memref<1x128xf32, #tpu.memory_space<vmem>>, %arg8: memref<1x128xf32, #tpu.memory_space<vmem>>, %arg9: memref<1x1xf32, #tpu.memory_space<vmem>>, %arg10: memref<8x128xf32, #tpu.memory_space<vmem>>, %arg11: memref<8x128xf32, #tpu.memory_space<vmem>>, %arg12: memref<8x128xf32, #tpu.memory_space<vmem>>, %arg13: memref<8x128xf32, #tpu.memory_space<vmem>>) attributes {dimension_semantics = [#tpu.dimension_semantics<parallel>], iteration_bounds = array<i64: 1>, scalar_prefetch = 0 : i64, scratch_operands = 0 : i64, tpu.core_type = #tpu.core_type<tc>, window_params = [{transform_indices = @transform_0, window_bounds = array<i64: 8, 256, 64>}, {pipeline_mode = #tpu.pipeline_mode<synchronous>, transform_indices = @transform_1, window_bounds = array<i64: 64, 128>}, {pipeline_mode = #tpu.pipeline_mode<synchronous>, transform_indices = @transform_2, window_bounds = array<i64: 1, 128>}, {pipeline_mode = #tpu.pipeline_mode<synchronous>, transform_indices = @transform_3, window_bounds = array<i64: 128, 256>}, {pipeline_mode = #tpu.pipeline_mode<synchronous>, transform_indices = @transform_4, window_bounds = array<i64: 1, 256>}, {pipeline_mode = #tpu.pipeline_mode<synchronous>, transform_indices = @transform_5, window_bounds = array<i64: 128, 128>}, {pipeline_mode = #tpu.pipeline_mode<synchronous>, transform_indices = @transform_6, window_bounds = array<i64: 1, 128>}, {pipeline_mode = #tpu.pipeline_mode<synchronous>, transform_indices = @transform_7, window_bounds = array<i64: 1, 128>}, {pipeline_mode = #tpu.pipeline_mode<synchronous>, transform_indices = @transform_8, window_bounds = array<i64: 1, 1>}, {transform_indices = @transform_9, window_bounds = array<i64: 8, 128>}, {transform_indices = @transform_10, window_bounds = array<i64: 8, 128>}, {transform_indices = @transform_11, window_bounds = array<i64: 8, 128>}, {transform_indices = @transform_12, window_bounds = array<i64: 8, 128>}]} {
    %c0 = arith.constant 0 : index
    %c0_0 = arith.constant 0 : index
    %c0_1 = arith.constant 0 : index
    %0 = vector.load %arg1[%c0, %c0_0, %c0_1] : memref<8x256x64xf32, #tpu.memory_space<vmem>>, vector<8x256x64xf32>
    %cst = arith.constant dense<0.000000e+00> : vector<8x64xf32>
    %1 = vector.multi_reduction <add>, %0, %cst [1] : vector<8x256x64xf32> to vector<8x64xf32>
    %cst_2 = arith.constant 3.906250e-03 : f32
    %2 = vector.broadcast %cst_2 : f32 to vector<8x64xf32>
    %3 = arith.mulf %1, %2 : vector<8x64xf32>
    %4 = arith.truncf %3 : vector<8x64xf32> to vector<8x64xbf16>
    %c0_3 = arith.constant 0 : index
    %c0_4 = arith.constant 0 : index
    %5 = vector.load %arg2[%c0_3, %c0_4] : memref<64x128xbf16, #tpu.memory_space<vmem>>, vector<64x128xbf16>
    %cst_5 = arith.constant dense<0.000000e+00> : vector<8x128xf32>
    %6 = tpu.matmul %4, %5, %cst_5 {dimension_numbers = #tpu.dot_dimension_numbers<[1], [0], [0], [1], [0, 0, 1, 1], [], []>} : vector<8x64xbf16>, vector<64x128xbf16>, vector<8x128xf32> -> vector<8x128xf32>
    %c0_6 = arith.constant 0 : index
    %c0_7 = arith.constant 0 : index
    %7 = vector.load %arg3[%c0_6, %c0_7] : memref<1x128xf32, #tpu.memory_space<vmem>>, vector<1x128xf32>
    %8 = vector.broadcast %7 : vector<1x128xf32> to vector<8x128xf32>
    %9 = arith.addf %6, %8 : vector<8x128xf32>
    %cst_8 = arith.constant 0.000000e+00 : f32
    %10 = vector.broadcast %cst_8 : f32 to vector<8x128xf32>
    %11 = arith.maximumf %9, %10 : vector<8x128xf32>
    %c0_9 = arith.constant 0 : index
    %c0_10 = arith.constant 0 : index
    %12 = vector.load %arg10[%c0_9, %c0_10] : memref<8x128xf32, #tpu.memory_space<vmem>>, vector<8x128xf32>
    tpu.vector_store %arg10[%c0_9, %c0_10], %11 {strides = array<i32>} : memref<8x128xf32, #tpu.memory_space<vmem>>, vector<8x128xf32>,
    %13 = arith.truncf %11 : vector<8x128xf32> to vector<8x128xbf16>
    %c0_11 = arith.constant 0 : index
    %c0_12 = arith.constant 0 : index
    %14 = vector.load %arg4[%c0_11, %c0_12] : memref<128x256xbf16, #tpu.memory_space<vmem>>, vector<128x256xbf16>
    %cst_13 = arith.constant dense<0.000000e+00> : vector<8x256xf32>
    %15 = tpu.matmul %13, %14, %cst_13 {dimension_numbers = #tpu.dot_dimension_numbers<[1], [0], [0], [1], [0, 0, 1, 1], [], []>} : vector<8x128xbf16>, vector<128x256xbf16>, vector<8x256xf32> -> vector<8x256xf32>
    %c0_14 = arith.constant 0 : index
    %c0_15 = arith.constant 0 : index
    %16 = vector.load %arg5[%c0_14, %c0_15] : memref<1x256xf32, #tpu.memory_space<vmem>>, vector<1x256xf32>
    %17 = vector.broadcast %16 : vector<1x256xf32> to vector<8x256xf32>
    %18 = arith.addf %15, %17 : vector<8x256xf32>
    %19 = vector.extract_strided_slice %18 {offsets = [0, 0], sizes = [8, 128], strides = [1, 1]} : vector<8x256xf32> to vector<8x128xf32>
    %20 = vector.extract_strided_slice %18 {offsets = [0, 128], sizes = [8, 128], strides = [1, 1]} : vector<8x256xf32> to vector<8x128xf32>
    %cst_16 = arith.constant 0.000000e+00 : f32
    %21 = vector.broadcast %cst_16 : f32 to vector<8x128xf32>
    %22 = arith.maximumf %20, %21 : vector<8x128xf32>
    %c0_17 = arith.constant 0 : index
    %c0_18 = arith.constant 0 : index
    %23 = vector.load %arg11[%c0_17, %c0_18] : memref<8x128xf32, #tpu.memory_space<vmem>>, vector<8x128xf32>
    tpu.vector_store %arg11[%c0_17, %c0_18], %19 {strides = array<i32>} : memref<8x128xf32, #tpu.memory_space<vmem>>, vector<8x128xf32>,
    %24 = tpu.iota {dimensions = array<i32: 1>} : vector<8x128xi32>
    %c8_i32 = arith.constant 8 : i32
    %25 = vector.broadcast %c8_i32 : i32 to vector<8x128xi32>
    %26 = arith.cmpi slt, %24, %25 : vector<8x128xi32>
    %cst_19 = arith.constant 0xFF800000 : f32
    %27 = vector.broadcast %cst_19 : f32 to vector<8x128xf32>
    %28 = arith.select %26, %19, %27 : vector<8x128xi1>, vector<8x128xf32>
    %cst_20 = arith.constant dense<0xFF800000> : vector<8xf32>
    %29 = vector.multi_reduction <maximumf>, %28, %cst_20 [1] : vector<8x128xf32> to vector<8xf32>
    %30 = vector.shape_cast %29 : vector<8xf32> to vector<8x1xf32>
    %31 = vector.broadcast %30 : vector<8x1xf32> to vector<8x128xf32>
    %32 = arith.subf %28, %31 : vector<8x128xf32>
    %33 = math.exp %32 : vector<8x128xf32>
    %cst_21 = arith.constant dense<0.000000e+00> : vector<8xf32>
    %34 = vector.multi_reduction <add>, %33, %cst_21 [1] : vector<8x128xf32> to vector<8xf32>
    %35 = vector.shape_cast %34 : vector<8xf32> to vector<8x1xf32>
    %36 = tpu.reciprocal %35 {approx = true} : vector<8x1xf32> -> vector<8x1xf32>
    %37 = vector.broadcast %36 : vector<8x1xf32> to vector<8x128xf32>
    %38 = arith.mulf %33, %37 : vector<8x128xf32>
    %c0_22 = arith.constant 0 : index
    %c0_23 = arith.constant 0 : index
    %39 = vector.load %arg12[%c0_22, %c0_23] : memref<8x128xf32, #tpu.memory_space<vmem>>, vector<8x128xf32>
    tpu.vector_store %arg12[%c0_22, %c0_23], %38 {strides = array<i32>} : memref<8x128xf32, #tpu.memory_space<vmem>>, vector<8x128xf32>,
    %40 = arith.truncf %22 : vector<8x128xf32> to vector<8x128xbf16>
    %c0_24 = arith.constant 0 : index
    %c0_25 = arith.constant 0 : index
    %41 = vector.load %arg6[%c0_24, %c0_25] : memref<128x128xbf16, #tpu.memory_space<vmem>>, vector<128x128xbf16>
    %cst_26 = arith.constant dense<0.000000e+00> : vector<8x128xf32>
    %42 = tpu.matmul %40, %41, %cst_26 {dimension_numbers = #tpu.dot_dimension_numbers<[1], [0], [0], [1], [0, 0, 1, 1], [], []>} : vector<8x128xbf16>, vector<128x128xbf16>, vector<8x128xf32> -> vector<8x128xf32>
    %c0_27 = arith.constant 0 : index
    %c0_28 = arith.constant 0 : index
    %43 = vector.load %arg7[%c0_27, %c0_28] : memref<1x128xf32, #tpu.memory_space<vmem>>, vector<1x128xf32>
    %44 = vector.broadcast %43 : vector<1x128xf32> to vector<8x128xf32>
    %45 = arith.addf %42, %44 : vector<8x128xf32>
    %cst_29 = arith.constant 0.000000e+00 : f32
    %46 = vector.broadcast %cst_29 : f32 to vector<8x128xf32>
    %47 = arith.maximumf %45, %46 : vector<8x128xf32>
    %c0_30 = arith.constant 0 : index
    %c0_31 = arith.constant 0 : index
    %48 = vector.load %arg8[%c0_30, %c0_31] : memref<1x128xf32, #tpu.memory_space<vmem>>, vector<1x128xf32>
    %49 = vector.broadcast %48 : vector<1x128xf32> to vector<8x128xf32>
    %50 = arith.mulf %47, %49 : vector<8x128xf32>
    %cst_32 = arith.constant dense<0.000000e+00> : vector<8xf32>
    %51 = vector.multi_reduction <add>, %50, %cst_32 [1] : vector<8x128xf32> to vector<8xf32>
    %52 = vector.shape_cast %51 : vector<8xf32> to vector<8x1xf32>
    %c0_33 = arith.constant 0 : index
    %c0_34 = arith.constant 0 : index
    %53 = vector.load %arg9[%c0_33, %c0_34] : memref<1x1xf32, #tpu.memory_space<vmem>>, vector<1x1xf32>
    %54 = vector.broadcast %53 : vector<1x1xf32> to vector<8x1xf32>
    %55 = arith.addf %52, %54 : vector<8x1xf32>
    %cst_35 = arith.constant 0.000000e+00 : f32
    %56 = vector.broadcast %cst_35 : f32 to vector<8x1xf32>
    %57 = arith.subf %56, %55 : vector<8x1xf32>
    %58 = math.exp %57 : vector<8x1xf32>
    %cst_36 = arith.constant 1.000000e+00 : f32
    %59 = vector.broadcast %cst_36 : f32 to vector<8x1xf32>
    %60 = arith.addf %59, %58 : vector<8x1xf32>
    %61 = tpu.reciprocal %60 {approx = true} : vector<8x1xf32> -> vector<8x1xf32>
    %62 = vector.shape_cast %61 : vector<8x1xf32> to vector<8x1xf32>
    %63 = vector.broadcast %62 : vector<8x1xf32> to vector<8x128xf32>
    %c0_37 = arith.constant 0 : index
    %c0_38 = arith.constant 0 : index
    %64 = vector.load %arg13[%c0_37, %c0_38] : memref<8x128xf32, #tpu.memory_space<vmem>>, vector<8x128xf32>
    tpu.vector_store %arg13[%c0_37, %c0_38], %63 {strides = array<i32>} : memref<8x128xf32, #tpu.memory_space<vmem>>, vector<8x128xf32>,
    return
  }
  func.func @transform_0(%arg0: i32) -> (i32, i32, i32) {
    %c0_i32 = arith.constant 0 : i32
    %c0_i32_0 = arith.constant 0 : i32
    %c0_i32_1 = arith.constant 0 : i32
    return %arg0, %c0_i32, %c0_i32_0 : i32, i32, i32
  }
  func.func @transform_1(%arg0: i32) -> (i32, i32) {
    %c0_i32 = arith.constant 0 : i32
    %c0_i32_0 = arith.constant 0 : i32
    %c0_i32_1 = arith.constant 0 : i32
    return %c0_i32, %c0_i32_0 : i32, i32
  }
  func.func @transform_2(%arg0: i32) -> (i32, i32) {
    %c0_i32 = arith.constant 0 : i32
    %c0_i32_0 = arith.constant 0 : i32
    %c0_i32_1 = arith.constant 0 : i32
    return %c0_i32, %c0_i32_0 : i32, i32
  }
  func.func @transform_3(%arg0: i32) -> (i32, i32) {
    %c0_i32 = arith.constant 0 : i32
    %c0_i32_0 = arith.constant 0 : i32
    %c0_i32_1 = arith.constant 0 : i32
    return %c0_i32, %c0_i32_0 : i32, i32
  }
  func.func @transform_4(%arg0: i32) -> (i32, i32) {
    %c0_i32 = arith.constant 0 : i32
    %c0_i32_0 = arith.constant 0 : i32
    %c0_i32_1 = arith.constant 0 : i32
    return %c0_i32, %c0_i32_0 : i32, i32
  }
  func.func @transform_5(%arg0: i32) -> (i32, i32) {
    %c0_i32 = arith.constant 0 : i32
    %c0_i32_0 = arith.constant 0 : i32
    %c0_i32_1 = arith.constant 0 : i32
    return %c0_i32, %c0_i32_0 : i32, i32
  }
  func.func @transform_6(%arg0: i32) -> (i32, i32) {
    %c0_i32 = arith.constant 0 : i32
    %c0_i32_0 = arith.constant 0 : i32
    %c0_i32_1 = arith.constant 0 : i32
    return %c0_i32, %c0_i32_0 : i32, i32
  }
  func.func @transform_7(%arg0: i32) -> (i32, i32) {
    %c0_i32 = arith.constant 0 : i32
    %c0_i32_0 = arith.constant 0 : i32
    %c0_i32_1 = arith.constant 0 : i32
    return %c0_i32, %c0_i32_0 : i32, i32
  }
  func.func @transform_8(%arg0: i32) -> (i32, i32) {
    %c0_i32 = arith.constant 0 : i32
    %c0_i32_0 = arith.constant 0 : i32
    %c0_i32_1 = arith.constant 0 : i32
    return %c0_i32, %c0_i32_0 : i32, i32
  }
  func.func @transform_9(%arg0: i32) -> (i32, i32) {
    %c0_i32 = arith.constant 0 : i32
    %c0_i32_0 = arith.constant 0 : i32
    return %arg0, %c0_i32 : i32, i32
  }
  func.func @transform_10(%arg0: i32) -> (i32, i32) {
    %c0_i32 = arith.constant 0 : i32
    %c0_i32_0 = arith.constant 0 : i32
    return %arg0, %c0_i32 : i32, i32
  }
  func.func @transform_11(%arg0: i32) -> (i32, i32) {
    %c0_i32 = arith.constant 0 : i32
    %c0_i32_0 = arith.constant 0 : i32
    return %arg0, %c0_i32 : i32, i32
  }
  func.func @transform_12(%arg0: i32) -> (i32, i32) {
    %c0_i32 = arith.constant 0 : i32
    %c0_i32_0 = arith.constant 0 : i32
    return %arg0, %c0_i32 : i32, i32
  }
}

</mosaic_0001>

<llo_original>
// kernel: tpu_custom_call.1
$region0: #{tpu_custom_call.1}
  #allocation0 [shape = 'u32[]', space=smem, size = 0x4, offset = 0x4, fixed_abs, tag = 'smem constant byte address 0x4 - core index']
  #allocation1 [shape = 'u32[72,128]{1,0:T(1,128)}', space=vmem, size = 0x9000, scoped, tag = 'internal scratch']
  #allocation2 [shape = 'f32[1,1]{1,0:T(1,128)S(1)}', space=vmem, size = 0x200, scoped, tag = 'scoped memory for tpu_custom_call.1']
  %s0 = inlined_call_operand.vmem [shape: f32[8,256,64], index: 0, kind: input, shape index: {}]
  %s1 = inlined_call_operand.vmem [shape: bf16[64,128], index: 1, kind: input, shape index: {}]
  %s2 = inlined_call_operand.vmem [shape: f32[1,128], index: 2, kind: input, shape index: {}]
  %s3 = inlined_call_operand.vmem [shape: bf16[128,256], index: 3, kind: input, shape index: {}]
  %s4 = inlined_call_operand.vmem [shape: f32[1,256], index: 4, kind: input, shape index: {}]
  %s5 = inlined_call_operand.vmem [shape: bf16[128,128], index: 5, kind: input, shape index: {}]
  %s6 = inlined_call_operand.vmem [shape: f32[1,128], index: 6, kind: input, shape index: {}]
  %s7 = inlined_call_operand.vmem [shape: f32[1,128], index: 7, kind: input, shape index: {}]
  %s8 = inlined_call_operand.<no memory space> [shape: f32[1,1], index: 8, kind: input, shape index: {}]
  %s9 = inlined_call_operand.hbm [shape: f32[8,128], index: 9, kind: output, shape index: {0}]
  %s10 = inlined_call_operand.hbm [shape: f32[8,128], index: 10, kind: output, shape index: {1}]
  %s11 = inlined_call_operand.hbm [shape: f32[8,128], index: 11, kind: output, shape index: {2}]
  %s12 = inlined_call_operand.hbm [shape: f32[8,128], index: 12, kind: output, shape index: {3}]
  %13 = xla_tuple %s9, %s10, %s11, %s12
  %s14 = sld [smem:[#allocation0]]
  $region70: #{tpu_custom_call.1} parent=0
    _
  %s16 = ssub.s32 1, %s14
  %s17 = scalar_select 0, %s16, %s14
  %v18 = vstv %s8
  %19 = vst [vmem:[#allocation2] sm:$0x1] %v18
  $region1: #{tpu_custom_call.1} parent=0
    #allocation3 [shape = 'u8[4096]{0}', space=vmem, size = 0x1000, scoped, tag = 'output window, operand 0, single buffered']
    #allocation4 [shape = 's32[1]{0}', space=sflag, size = 0x4, scoped, tag = 'scoped memory for tpu_custom_call.1']
    #allocation5 [shape = 'u8[4096]{0}', space=vmem, size = 0x1000, scoped, tag = 'output window, operand 1, single buffered']
    #allocation6 [shape = 's32[1]{0}', space=sflag, size = 0x4, scoped, tag = 'scoped memory for tpu_custom_call.1']
    #allocation7 [shape = 'u8[4096]{0}', space=vmem, size = 0x1000, scoped, tag = 'output window, operand 2, single buffered']
    #allocation8 [shape = 'u8[4096]{0}', space=vmem, size = 0x1000, scoped, tag = 'output window, operand 3, single buffered']
    #allocation9 [shape = 's32[1]{0}', space=sflag, size = 0x4, scoped, tag = 'scoped memory for tpu_custom_call.1']
    %20 = vsyncpa [#allocation4], 0
    %21 = vsyncpa [#allocation6], 0
    %22 = vsyncpa [#allocation9], 0
    // Predicated region
    $region2: #{tpu_custom_call.1} parent=1 // pred_check
      _
    $region3: #{tpu_custom_call.1} parent=1 // pred_check_branch
      %24 = sbr.rel (0) target = $region5
    $region4: #{tpu_custom_call.1} parent=1 // pred_region
      _
    $region5: #{tpu_custom_call.1} parent=1 // pred_fallthru
      _
    // Predicated region
    $region6: #{tpu_custom_call.1} parent=1 // pred_check
      _
    $region7: #{tpu_custom_call.1} parent=1 // pred_check_branch
      %26 = sbr.rel (0) target = $region9
    $region8: #{tpu_custom_call.1} parent=1 // pred_region
      _
    $region9: #{tpu_custom_call.1} parent=1 // pred_fallthru
      _
    // Predicated region
    $region10: #{tpu_custom_call.1} parent=1 // pred_check
      _
    $region11: #{tpu_custom_call.1} parent=1 // pred_check_branch
      %28 = sbr.rel (0) target = $region13
    $region12: #{tpu_custom_call.1} parent=1 // pred_region
      _
    $region13: #{tpu_custom_call.1} parent=1 // pred_fallthru
      _
    // Predicated region
    $region14: #{tpu_custom_call.1} parent=1 // pred_check
      _
    $region15: #{tpu_custom_call.1} parent=1 // pred_check_branch
      %30 = sbr.rel (0) target = $region17
    $region16: #{tpu_custom_call.1} parent=1 // pred_region
      _
    $region17: #{tpu_custom_call.1} parent=1 // pred_fallthru
      _
    // Predicated region
    $region18: #{tpu_custom_call.1} parent=1 // pred_check
      _
    $region19: #{tpu_custom_call.1} parent=1 // pred_check_branch
      %32 = sbr.rel (0) target = $region21
    $region20: #{tpu_custom_call.1} parent=1 // pred_region
      _
    $region21: #{tpu_custom_call.1} parent=1 // pred_fallthru
      _
    // Predicated region
    $region22: #{tpu_custom_call.1} parent=1 // pred_check
      _
    $region23: #{tpu_custom_call.1} parent=1 // pred_check_branch
      %34 = sbr.rel (0) target = $region25
    $region24: #{tpu_custom_call.1} parent=1 // pred_region
      _
    $region25: #{tpu_custom_call.1} parent=1 // pred_fallthru
      _
    // Predicated region
    $region26: #{tpu_custom_call.1} parent=1 // pred_check
      _
    $region27: #{tpu_custom_call.1} parent=1 // pred_check_branch
      %36 = sbr.rel (0) target = $region29
    $region28: #{tpu_custom_call.1} parent=1 // pred_region
      _
    $region29: #{tpu_custom_call.1} parent=1 // pred_fallthru
      _
    // Predicated region
    $region30: #{tpu_custom_call.1} parent=1 // pred_check
      _
    $region31: #{tpu_custom_call.1} parent=1 // pred_check_branch
      %38 = sbr.rel (0) target = $region33
    $region32: #{tpu_custom_call.1} parent=1 // pred_region
      _
    $region33: #{tpu_custom_call.1} parent=1 // pred_fallthru
      _
    // Predicated region
    $region34: #{tpu_custom_call.1} parent=1 // pred_check
      _
    $region35: #{tpu_custom_call.1} parent=1 // pred_check_branch
      %40 = sbr.rel (0) target = $region37
    $region36: #{tpu_custom_call.1} parent=1 // pred_region
      _
    $region37: #{tpu_custom_call.1} parent=1 // pred_fallthru
      _
    %v42 = vld [vmem:[%s0] sm:$0xff]
    %v43 = vld [vmem:[%s0 + $0x8] sm:$0xff]
    %v44 = vld [vmem:[%s0 + $0x10] sm:$0xff]
    %v45 = vld [vmem:[%s0 + $0x18] sm:$0xff]
    %v46 = vld [vmem:[%s0 + $0x20] sm:$0xff]
    %v47 = vld [vmem:[%s0 + $0x28] sm:$0xff]
    %v48 = vld [vmem:[%s0 + $0x30] sm:$0xff]
    %v49 = vld [vmem:[%s0 + $0x38] sm:$0xff]
    %v50 = vld [vmem:[%s0 + $0x40] sm:$0xff]
    %v51 = vld [vmem:[%s0 + $0x48] sm:$0xff]
    %v52 = vld [vmem:[%s0 + $0x50] sm:$0xff]
    %v53 = vld [vmem:[%s0 + $0x58] sm:$0xff]
    %v54 = vld [vmem:[%s0 + $0x60] sm:$0xff]
    %v55 = vld [vmem:[%s0 + $0x68] sm:$0xff]
    %v56 = vld [vmem:[%s0 + $0x70] sm:$0xff]
    %v57 = vld [vmem:[%s0 + $0x78] sm:$0xff]
    %v58 = vld [vmem:[%s0 + $0x80] sm:$0xff]
    %v59 = vld [vmem:[%s0 + $0x88] sm:$0xff]
    %v60 = vld [vmem:[%s0 + $0x90] sm:$0xff]
    %v61 = vld [vmem:[%s0 + $0x98] sm:$0xff]
    %v62 = vld [vmem:[%s0 + $0xa0] sm:$0xff]
    %v63 = vld [vmem:[%s0 + $0xa8] sm:$0xff]
    %v64 = vld [vmem:[%s0 + $0xb0] sm:$0xff]
    %v65 = vld [vmem:[%s0 + $0xb8] sm:$0xff]
    %v66 = vld [vmem:[%s0 + $0xc0] sm:$0xff]
    %v67 = vld [vmem:[%s0 + $0xc8] sm:$0xff]
    %v68 = vld [vmem:[%s0 + $0xd0] sm:$0xff]
    %v69 = vld [vmem:[%s0 + $0xd8] sm:$0xff]
    %v70 = vld [vmem:[%s0 + $0xe0] sm:$0xff]
    %v71 = vld [vmem:[%s0 + $0xe8] sm:$0xff]
    %v72 = vld [vmem:[%s0 + $0xf0] sm:$0xff]
    %v73 = vld [vmem:[%s0 + $0xf8] sm:$0xff]
    %v74 = vld [vmem:[%s0 + $0x100] sm:$0xff]
    %v75 = vld [vmem:[%s0 + $0x108] sm:$0xff]
    %v76 = vld [vmem:[%s0 + $0x110] sm:$0xff]
    %v77 = vld [vmem:[%s0 + $0x118] sm:$0xff]
    %v78 = vld [vmem:[%s0 + $0x120] sm:$0xff]
    %v79 = vld [vmem:[%s0 + $0x128] sm:$0xff]
    %v80 = vld [vmem:[%s0 + $0x130] sm:$0xff]
    %v81 = vld [vmem:[%s0 + $0x138] sm:$0xff]
    %v82 = vld [vmem:[%s0 + $0x140] sm:$0xff]
    %v83 = vld [vmem:[%s0 + $0x148] sm:$0xff]
    %v84 = vld [vmem:[%s0 + $0x150] sm:$0xff]
    %v85 = vld [vmem:[%s0 + $0x158] sm:$0xff]
    %v86 = vld [vmem:[%s0 + $0x160] sm:$0xff]
    %v87 = vld [vmem:[%s0 + $0x168] sm:$0xff]
    %v88 = vld [vmem:[%s0 + $0x170] sm:$0xff]
    %v89 = vld [vmem:[%s0 + $0x178] sm:$0xff]
    %v90 = vld [vmem:[%s0 + $0x180] sm:$0xff]
    %v91 = vld [vmem:[%s0 + $0x188] sm:$0xff]
    %v92 = vld [vmem:[%s0 + $0x190] sm:$0xff]
    %v93 = vld [vmem:[%s0 + $0x198] sm:$0xff]
    %v94 = vld [vmem:[%s0 + $0x1a0] sm:$0xff]
    %v95 = vld [vmem:[%s0 + $0x1a8] sm:$0xff]
    %v96 = vld [vmem:[%s0 + $0x1b0] sm:$0xff]
    %v97 = vld [vmem:[%s0 + $0x1b8] sm:$0xff]
    %v98 = vld [vmem:[%s0 + $0x1c0] sm:$0xff]
    %v99 = vld [vmem:[%s0 + $0x1c8] sm:$0xff]
    %v100 = vld [vmem:[%s0 + $0x1d0] sm:$0xff]
    %v101 = vld [vmem:[%s0 + $0x1d8] sm:$0xff]
    %v102 = vld [vmem:[%s0 + $0x1e0] sm:$0xff]
    %v103 = vld [vmem:[%s0 + $0x1e8] sm:$0xff]
    %v104 = vld [vmem:[%s0 + $0x1f0] sm:$0xff]
    %v105 = vld [vmem:[%s0 + $0x1f8] sm:$0xff]
    %v106 = vld [vmem:[%s0 + $0x200] sm:$0xff]
    %v107 = vld [vmem:[%s0 + $0x208] sm:$0xff]
    %v108 = vld [vmem:[%s0 + $0x210] sm:$0xff]
    %v109 = vld [vmem:[%s0 + $0x218] sm:$0xff]
    %v110 = vld [vmem:[%s0 + $0x220] sm:$0xff]
    %v111 = vld [vmem:[%s0 + $0x228] sm:$0xff]
    %v112 = vld [vmem:[%s0 + $0x230] sm:$0xff]
    %v113 = vld [vmem:[%s0 + $0x238] sm:$0xff]
    %v114 = vld [vmem:[%s0 + $0x240] sm:$0xff]
    %v115 = vld [vmem:[%s0 + $0x248] sm:$0xff]
    %v116 = vld [vmem:[%s0 + $0x250] sm:$0xff]
    %v117 = vld [vmem:[%s0 + $0x258] sm:$0xff]
    %v118 = vld [vmem:[%s0 + $0x260] sm:$0xff]
    %v119 = vld [vmem:[%s0 + $0x268] sm:$0xff]
    %v120 = vld [vmem:[%s0 + $0x270] sm:$0xff]
    %v121 = vld [vmem:[%s0 + $0x278] sm:$0xff]
    %v122 = vld [vmem:[%s0 + $0x280] sm:$0xff]
    %v123 = vld [vmem:[%s0 + $0x288] sm:$0xff]
    %v124 = vld [vmem:[%s0 + $0x290] sm:$0xff]
    %v125 = vld [vmem:[%s0 + $0x298] sm:$0xff]
    %v126 = vld [vmem:[%s0 + $0x2a0] sm:$0xff]
    %v127 = vld [vmem:[%s0 + $0x2a8] sm:$0xff]
    %v128 = vld [vmem:[%s0 + $0x2b0] sm:$0xff]
    %v129 = vld [vmem:[%s0 + $0x2b8] sm:$0xff]
    %v130 = vld [vmem:[%s0 + $0x2c0] sm:$0xff]
    %v131 = vld [vmem:[%s0 + $0x2c8] sm:$0xff]
    %v132 = vld [vmem:[%s0 + $0x2d0] sm:$0xff]
    %v133 = vld [vmem:[%s0 + $0x2d8] sm:$0xff]
    %v134 = vld [vmem:[%s0 + $0x2e0] sm:$0xff]
    %v135 = vld [vmem:[%s0 + $0x2e8] sm:$0xff]
    %v136 = vld [vmem:[%s0 + $0x2f0] sm:$0xff]
    %v137 = vld [vmem:[%s0 + $0x2f8] sm:$0xff]
    %v138 = vld [vmem:[%s0 + $0x300] sm:$0xff]
    %v139 = vld [vmem:[%s0 + $0x308] sm:$0xff]
    %v140 = vld [vmem:[%s0 + $0x310] sm:$0xff]
    %v141 = vld [vmem:[%s0 + $0x318] sm:$0xff]
    %v142 = vld [vmem:[%s0 + $0x320] sm:$0xff]
    %v143 = vld [vmem:[%s0 + $0x328] sm:$0xff]
    %v144 = vld [vmem:[%s0 + $0x330] sm:$0xff]
    %v145 = vld [vmem:[%s0 + $0x338] sm:$0xff]
    %v146 = vld [vmem:[%s0 + $0x340] sm:$0xff]
    %v147 = vld [vmem:[%s0 + $0x348] sm:$0xff]
    %v148 = vld [vmem:[%s0 + $0x350] sm:$0xff]
    %v149 = vld [vmem:[%s0 + $0x358] sm:$0xff]
    %v150 = vld [vmem:[%s0 + $0x360] sm:$0xff]
    %v151 = vld [vmem:[%s0 + $0x368] sm:$0xff]
    %v152 = vld [vmem:[%s0 + $0x370] sm:$0xff]
    %v153 = vld [vmem:[%s0 + $0x378] sm:$0xff]
    %v154 = vld [vmem:[%s0 + $0x380] sm:$0xff]
    %v155 = vld [vmem:[%s0 + $0x388] sm:$0xff]
    %v156 = vld [vmem:[%s0 + $0x390] sm:$0xff]
    %v157 = vld [vmem:[%s0 + $0x398] sm:$0xff]
    %v158 = vld [vmem:[%s0 + $0x3a0] sm:$0xff]
    %v159 = vld [vmem:[%s0 + $0x3a8] sm:$0xff]
    %v160 = vld [vmem:[%s0 + $0x3b0] sm:$0xff]
    %v161 = vld [vmem:[%s0 + $0x3b8] sm:$0xff]
    %v162 = vld [vmem:[%s0 + $0x3c0] sm:$0xff]
    %v163 = vld [vmem:[%s0 + $0x3c8] sm:$0xff]
    %v164 = vld [vmem:[%s0 + $0x3d0] sm:$0xff]
    %v165 = vld [vmem:[%s0 + $0x3d8] sm:$0xff]
    %v166 = vld [vmem:[%s0 + $0x3e0] sm:$0xff]
    %v167 = vld [vmem:[%s0 + $0x3e8] sm:$0xff]
    %v168 = vld [vmem:[%s0 + $0x3f0] sm:$0xff]
    %v169 = vld [vmem:[%s0 + $0x3f8] sm:$0xff]
    %v170 = vld [vmem:[%s0 + $0x400] sm:$0xff]
    %v171 = vld [vmem:[%s0 + $0x408] sm:$0xff]
    %v172 = vld [vmem:[%s0 + $0x410] sm:$0xff]
    %v173 = vld [vmem:[%s0 + $0x418] sm:$0xff]
    %v174 = vld [vmem:[%s0 + $0x420] sm:$0xff]
    %v175 = vld [vmem:[%s0 + $0x428] sm:$0xff]
    %v176 = vld [vmem:[%s0 + $0x430] sm:$0xff]
    %v177 = vld [vmem:[%s0 + $0x438] sm:$0xff]
    %v178 = vld [vmem:[%s0 + $0x440] sm:$0xff]
    %v179 = vld [vmem:[%s0 + $0x448] sm:$0xff]
    %v180 = vld [vmem:[%s0 + $0x450] sm:$0xff]
    %v181 = vld [vmem:[%s0 + $0x458] sm:$0xff]
    %v182 = vld [vmem:[%s0 + $0x460] sm:$0xff]
    %v183 = vld [vmem:[%s0 + $0x468] sm:$0xff]
    %v184 = vld [vmem:[%s0 + $0x470] sm:$0xff]
    %v185 = vld [vmem:[%s0 + $0x478] sm:$0xff]
    %v186 = vld [vmem:[%s0 + $0x480] sm:$0xff]
    %v187 = vld [vmem:[%s0 + $0x488] sm:$0xff]
    %v188 = vld [vmem:[%s0 + $0x490] sm:$0xff]
    %v189 = vld [vmem:[%s0 + $0x498] sm:$0xff]
    %v190 = vld [vmem:[%s0 + $0x4a0] sm:$0xff]
    %v191 = vld [vmem:[%s0 + $0x4a8] sm:$0xff]
    %v192 = vld [vmem:[%s0 + $0x4b0] sm:$0xff]
    %v193 = vld [vmem:[%s0 + $0x4b8] sm:$0xff]
    %v194 = vld [vmem:[%s0 + $0x4c0] sm:$0xff]
    %v195 = vld [vmem:[%s0 + $0x4c8] sm:$0xff]
    %v196 = vld [vmem:[%s0 + $0x4d0] sm:$0xff]
    %v197 = vld [vmem:[%s0 + $0x4d8] sm:$0xff]
    %v198 = vld [vmem:[%s0 + $0x4e0] sm:$0xff]
    %v199 = vld [vmem:[%s0 + $0x4e8] sm:$0xff]
    %v200 = vld [vmem:[%s0 + $0x4f0] sm:$0xff]
    %v201 = vld [vmem:[%s0 + $0x4f8] sm:$0xff]
    %v202 = vld [vmem:[%s0 + $0x500] sm:$0xff]
    %v203 = vld [vmem:[%s0 + $0x508] sm:$0xff]
    %v204 = vld [vmem:[%s0 + $0x510] sm:$0xff]
    %v205 = vld [vmem:[%s0 + $0x518] sm:$0xff]
    %v206 = vld [vmem:[%s0 + $0x520] sm:$0xff]
    %v207 = vld [vmem:[%s0 + $0x528] sm:$0xff]
    %v208 = vld [vmem:[%s0 + $0x530] sm:$0xff]
    %v209 = vld [vmem:[%s0 + $0x538] sm:$0xff]
    %v210 = vld [vmem:[%s0 + $0x540] sm:$0xff]
    %v211 = vld [vmem:[%s0 + $0x548] sm:$0xff]
    %v212 = vld [vmem:[%s0 + $0x550] sm:$0xff]
    %v213 = vld [vmem:[%s0 + $0x558] sm:$0xff]
    %v214 = vld [vmem:[%s0 + $0x560] sm:$0xff]
    %v215 = vld [vmem:[%s0 + $0x568] sm:$0xff]
    %v216 = vld [vmem:[%s0 + $0x570] sm:$0xff]
    %v217 = vld [vmem:[%s0 + $0x578] sm:$0xff]
    %v218 = vld [vmem:[%s0 + $0x580] sm:$0xff]
    %v219 = vld [vmem:[%s0 + $0x588] sm:$0xff]
    %v220 = vld [vmem:[%s0 + $0x590] sm:$0xff]
    %v221 = vld [vmem:[%s0 + $0x598] sm:$0xff]
    %v222 = vld [vmem:[%s0 + $0x5a0] sm:$0xff]
    %v223 = vld [vmem:[%s0 + $0x5a8] sm:$0xff]
    %v224 = vld [vmem:[%s0 + $0x5b0] sm:$0xff]
    %v225 = vld [vmem:[%s0 + $0x5b8] sm:$0xff]
    %v226 = vld [vmem:[%s0 + $0x5c0] sm:$0xff]
    %v227 = vld [vmem:[%s0 + $0x5c8] sm:$0xff]
    %v228 = vld [vmem:[%s0 + $0x5d0] sm:$0xff]
    %v229 = vld [vmem:[%s0 + $0x5d8] sm:$0xff]
    %v230 = vld [vmem:[%s0 + $0x5e0] sm:$0xff]
    %v231 = vld [vmem:[%s0 + $0x5e8] sm:$0xff]
    %v232 = vld [vmem:[%s0 + $0x5f0] sm:$0xff]
    %v233 = vld [vmem:[%s0 + $0x5f8] sm:$0xff]
    %v234 = vld [vmem:[%s0 + $0x600] sm:$0xff]
    %v235 = vld [vmem:[%s0 + $0x608] sm:$0xff]
    %v236 = vld [vmem:[%s0 + $0x610] sm:$0xff]
    %v237 = vld [vmem:[%s0 + $0x618] sm:$0xff]
    %v238 = vld [vmem:[%s0 + $0x620] sm:$0xff]
    %v239 = vld [vmem:[%s0 + $0x628] sm:$0xff]
    %v240 = vld [vmem:[%s0 + $0x630] sm:$0xff]
    %v241 = vld [vmem:[%s0 + $0x638] sm:$0xff]
    %v242 = vld [vmem:[%s0 + $0x640] sm:$0xff]
    %v243 = vld [vmem:[%s0 + $0x648] sm:$0xff]
    %v244 = vld [vmem:[%s0 + $0x650] sm:$0xff]
    %v245 = vld [vmem:[%s0 + $0x658] sm:$0xff]
    %v246 = vld [vmem:[%s0 + $0x660] sm:$0xff]
    %v247 = vld [vmem:[%s0 + $0x668] sm:$0xff]
    %v248 = vld [vmem:[%s0 + $0x670] sm:$0xff]
    %v249 = vld [vmem:[%s0 + $0x678] sm:$0xff]
    %v250 = vld [vmem:[%s0 + $0x680] sm:$0xff]
    %v251 = vld [vmem:[%s0 + $0x688] sm:$0xff]
    %v252 = vld [vmem:[%s0 + $0x690] sm:$0xff]
    %v253 = vld [vmem:[%s0 + $0x698] sm:$0xff]
    %v254 = vld [vmem:[%s0 + $0x6a0] sm:$0xff]
    %v255 = vld [vmem:[%s0 + $0x6a8] sm:$0xff]
    %v256 = vld [vmem:[%s0 + $0x6b0] sm:$0xff]
    %v257 = vld [vmem:[%s0 + $0x6b8] sm:$0xff]
    %v258 = vld [vmem:[%s0 + $0x6c0] sm:$0xff]
    %v259 = vld [vmem:[%s0 + $0x6c8] sm:$0xff]
    %v260 = vld [vmem:[%s0 + $0x6d0] sm:$0xff]
    %v261 = vld [vmem:[%s0 + $0x6d8] sm:$0xff]
    %v262 = vld [vmem:[%s0 + $0x6e0] sm:$0xff]
    %v263 = vld [vmem:[%s0 + $0x6e8] sm:$0xff]
    %v264 = vld [vmem:[%s0 + $0x6f0] sm:$0xff]
    %v265 = vld [vmem:[%s0 + $0x6f8] sm:$0xff]
    %v266 = vld [vmem:[%s0 + $0x700] sm:$0xff]
    %v267 = vld [vmem:[%s0 + $0x708] sm:$0xff]
    %v268 = vld [vmem:[%s0 + $0x710] sm:$0xff]
    %v269 = vld [vmem:[%s0 + $0x718] sm:$0xff]
    %v270 = vld [vmem:[%s0 + $0x720] sm:$0xff]
    %v271 = vld [vmem:[%s0 + $0x728] sm:$0xff]
    %v272 = vld [vmem:[%s0 + $0x730] sm:$0xff]
    %v273 = vld [vmem:[%s0 + $0x738] sm:$0xff]
    %v274 = vld [vmem:[%s0 + $0x740] sm:$0xff]
    %v275 = vld [vmem:[%s0 + $0x748] sm:$0xff]
    %v276 = vld [vmem:[%s0 + $0x750] sm:$0xff]
    %v277 = vld [vmem:[%s0 + $0x758] sm:$0xff]
    %v278 = vld [vmem:[%s0 + $0x760] sm:$0xff]
    %v279 = vld [vmem:[%s0 + $0x768] sm:$0xff]
    %v280 = vld [vmem:[%s0 + $0x770] sm:$0xff]
    %v281 = vld [vmem:[%s0 + $0x778] sm:$0xff]
    %v282 = vld [vmem:[%s0 + $0x780] sm:$0xff]
    %v283 = vld [vmem:[%s0 + $0x788] sm:$0xff]
    %v284 = vld [vmem:[%s0 + $0x790] sm:$0xff]
    %v285 = vld [vmem:[%s0 + $0x798] sm:$0xff]
    %v286 = vld [vmem:[%s0 + $0x7a0] sm:$0xff]
    %v287 = vld [vmem:[%s0 + $0x7a8] sm:$0xff]
    %v288 = vld [vmem:[%s0 + $0x7b0] sm:$0xff]
    %v289 = vld [vmem:[%s0 + $0x7b8] sm:$0xff]
    %v290 = vld [vmem:[%s0 + $0x7c0] sm:$0xff]
    %v291 = vld [vmem:[%s0 + $0x7c8] sm:$0xff]
    %v292 = vld [vmem:[%s0 + $0x7d0] sm:$0xff]
    %v293 = vld [vmem:[%s0 + $0x7d8] sm:$0xff]
    %v294 = vld [vmem:[%s0 + $0x7e0] sm:$0xff]
    %v295 = vld [vmem:[%s0 + $0x7e8] sm:$0xff]
    %v296 = vld [vmem:[%s0 + $0x7f0] sm:$0xff]
    %v297 = vld [vmem:[%s0 + $0x7f8] sm:$0xff]
    %vm298 = vcmask 523264
    %v299 = vsel %vm298, %v42, 0.0
    %v300 = vsel %vm298, %v43, 0.0
    %v301 = vadd.f32 %v299, %v300
    %v302 = vsel %vm298, %v44, 0.0
    %v303 = vadd.f32 %v301, %v302
    %v304 = vsel %vm298, %v45, 0.0
    %v305 = vadd.f32 %v303, %v304
    %v306 = vsel %vm298, %v46, 0.0
    %v307 = vadd.f32 %v305, %v306
    %v308 = vsel %vm298, %v47, 0.0
    %v309 = vadd.f32 %v307, %v308
    %v310 = vsel %vm298, %v48, 0.0
    %v311 = vadd.f32 %v309, %v310
    %v312 = vsel %vm298, %v49, 0.0
    %v313 = vadd.f32 %v311, %v312
    %v314 = vsel %vm298, %v50, 0.0
    %v315 = vadd.f32 %v313, %v314
    %v316 = vsel %vm298, %v51, 0.0
    %v317 = vadd.f32 %v315, %v316
    %v318 = vsel %vm298, %v52, 0.0
    %v319 = vadd.f32 %v317, %v318
    %v320 = vsel %vm298, %v53, 0.0
    %v321 = vadd.f32 %v319, %v320
    %v322 = vsel %vm298, %v54, 0.0
    %v323 = vadd.f32 %v321, %v322
    %v324 = vsel %vm298, %v55, 0.0
    %v325 = vadd.f32 %v323, %v324
    %v326 = vsel %vm298, %v56, 0.0
    %v327 = vadd.f32 %v325, %v326
    %v328 = vsel %vm298, %v57, 0.0
    %v329 = vadd.f32 %v327, %v328
    %v330 = vsel %vm298, %v58, 0.0
    %v331 = vadd.f32 %v329, %v330
    %v332 = vsel %vm298, %v59, 0.0
    %v333 = vadd.f32 %v331, %v332
    %v334 = vsel %vm298, %v60, 0.0
    %v335 = vadd.f32 %v333, %v334
    %v336 = vsel %vm298, %v61, 0.0
    %v337 = vadd.f32 %v335, %v336
    %v338 = vsel %vm298, %v62, 0.0
    %v339 = vadd.f32 %v337, %v338
    %v340 = vsel %vm298, %v63, 0.0
    %v341 = vadd.f32 %v339, %v340
    %v342 = vsel %vm298, %v64, 0.0
    %v343 = vadd.f32 %v341, %v342
    %v344 = vsel %vm298, %v65, 0.0
    %v345 = vadd.f32 %v343, %v344
    %v346 = vsel %vm298, %v66, 0.0
    %v347 = vadd.f32 %v345, %v346
    %v348 = vsel %vm298, %v67, 0.0
    %v349 = vadd.f32 %v347, %v348
    %v350 = vsel %vm298, %v68, 0.0
    %v351 = vadd.f32 %v349, %v350
    %v352 = vsel %vm298, %v69, 0.0
    %v353 = vadd.f32 %v351, %v352
    %v354 = vsel %vm298, %v70, 0.0
    %v355 = vadd.f32 %v353, %v354
    %v356 = vsel %vm298, %v71, 0.0
    %v357 = vadd.f32 %v355, %v356
    %v358 = vsel %vm298, %v72, 0.0
    %v359 = vadd.f32 %v357, %v358
    %v360 = vsel %vm298, %v73, 0.0
    %v361 = vadd.f32 %v359, %v360
    %v362 = vrot.slane %v361, 4
    %v363 = vadd.f32 %v361, %v362
    %v364 = vrot.slane %v363, 2
    %v365 = vadd.f32 %v363, %v364
    %v366 = vrot.slane %v365, 1
    %v367 = vadd.f32 %v365, %v366
    %v368 = vsel %vm298, %v74, 0.0
    %v369 = vsel %vm298, %v75, 0.0
    %v370 = vadd.f32 %v368, %v369
    %v371 = vsel %vm298, %v76, 0.0
    %v372 = vadd.f32 %v370, %v371
    %v373 = vsel %vm298, %v77, 0.0
    %v374 = vadd.f32 %v372, %v373
    %v375 = vsel %vm298, %v78, 0.0
    %v376 = vadd.f32 %v374, %v375
    %v377 = vsel %vm298, %v79, 0.0
    %v378 = vadd.f32 %v376, %v377
    %v379 = vsel %vm298, %v80, 0.0
    %v380 = vadd.f32 %v378, %v379
    %v381 = vsel %vm298, %v81, 0.0
    %v382 = vadd.f32 %v380, %v381
    %v383 = vsel %vm298, %v82, 0.0
    %v384 = vadd.f32 %v382, %v383
    %v385 = vsel %vm298, %v83, 0.0
    %v386 = vadd.f32 %v384, %v385
    %v387 = vsel %vm298, %v84, 0.0
    %v388 = vadd.f32 %v386, %v387
    %v389 = vsel %vm298, %v85, 0.0
    %v390 = vadd.f32 %v388, %v389
    %v391 = vsel %vm298, %v86, 0.0
    %v392 = vadd.f32 %v390, %v391
    %v393 = vsel %vm298, %v87, 0.0
    %v394 = vadd.f32 %v392, %v393
    %v395 = vsel %vm298, %v88, 0.0
    %v396 = vadd.f32 %v394, %v395
    %v397 = vsel %vm298, %v89, 0.0
    %v398 = vadd.f32 %v396, %v397
    %v399 = vsel %vm298, %v90, 0.0
    %v400 = vadd.f32 %v398, %v399
    %v401 = vsel %vm298, %v91, 0.0
    %v402 = vadd.f32 %v400, %v401
    %v403 = vsel %vm298, %v92, 0.0
    %v404 = vadd.f32 %v402, %v403
    %v405 = vsel %vm298, %v93, 0.0
    %v406 = vadd.f32 %v404, %v405
    %v407 = vsel %vm298, %v94, 0.0
    %v408 = vadd.f32 %v406, %v407
    %v409 = vsel %vm298, %v95, 0.0
    %v410 = vadd.f32 %v408, %v409
    %v411 = vsel %vm298, %v96, 0.0
    %v412 = vadd.f32 %v410, %v411
    %v413 = vsel %vm298, %v97, 0.0
    %v414 = vadd.f32 %v412, %v413
    %v415 = vsel %vm298, %v98, 0.0
    %v416 = vadd.f32 %v414, %v415
    %v417 = vsel %vm298, %v99, 0.0
    %v418 = vadd.f32 %v416, %v417
    %v419 = vsel %vm298, %v100, 0.0
    %v420 = vadd.f32 %v418, %v419
    %v421 = vsel %vm298, %v101, 0.0
    %v422 = vadd.f32 %v420, %v421
    %v423 = vsel %vm298, %v102, 0.0
    %v424 = vadd.f32 %v422, %v423
    %v425 = vsel %vm298, %v103, 0.0
    %v426 = vadd.f32 %v424, %v425
    %v427 = vsel %vm298, %v104, 0.0
    %v428 = vadd.f32 %v426, %v427
    %v429 = vsel %vm298, %v105, 0.0
    %v430 = vadd.f32 %v428, %v429
    %v431 = vrot.slane %v430, 4
    %v432 = vadd.f32 %v430, %v431
    %v433 = vrot.slane %v432, 2
    %v434 = vadd.f32 %v432, %v433
    %v435 = vrot.slane %v434, 1
    %v436 = vadd.f32 %v434, %v435
    %v437 = vsel %vm298, %v106, 0.0
    %v438 = vsel %vm298, %v107, 0.0
    %v439 = vadd.f32 %v437, %v438
    %v440 = vsel %vm298, %v108, 0.0
    %v441 = vadd.f32 %v439, %v440
    %v442 = vsel %vm298, %v109, 0.0
    %v443 = vadd.f32 %v441, %v442
    %v444 = vsel %vm298, %v110, 0.0
    %v445 = vadd.f32 %v443, %v444
    %v446 = vsel %vm298, %v111, 0.0
    %v447 = vadd.f32 %v445, %v446
    %v448 = vsel %vm298, %v112, 0.0
    %v449 = vadd.f32 %v447, %v448
    %v450 = vsel %vm298, %v113, 0.0
    %v451 = vadd.f32 %v449, %v450
    %v452 = vsel %vm298, %v114, 0.0
    %v453 = vadd.f32 %v451, %v452
    %v454 = vsel %vm298, %v115, 0.0
    %v455 = vadd.f32 %v453, %v454
    %v456 = vsel %vm298, %v116, 0.0
    %v457 = vadd.f32 %v455, %v456
    %v458 = vsel %vm298, %v117, 0.0
    %v459 = vadd.f32 %v457, %v458
    %v460 = vsel %vm298, %v118, 0.0
    %v461 = vadd.f32 %v459, %v460
    %v462 = vsel %vm298, %v119, 0.0
    %v463 = vadd.f32 %v461, %v462
    %v464 = vsel %vm298, %v120, 0.0
    %v465 = vadd.f32 %v463, %v464
    %v466 = vsel %vm298, %v121, 0.0
    %v467 = vadd.f32 %v465, %v466
    %v468 = vsel %vm298, %v122, 0.0
    %v469 = vadd.f32 %v467, %v468
    %v470 = vsel %vm298, %v123, 0.0
    %v471 = vadd.f32 %v469, %v470
    %v472 = vsel %vm298, %v124, 0.0
    %v473 = vadd.f32 %v471, %v472
    %v474 = vsel %vm298, %v125, 0.0
    %v475 = vadd.f32 %v473, %v474
    %v476 = vsel %vm298, %v126, 0.0
    %v477 = vadd.f32 %v475, %v476
    %v478 = vsel %vm298, %v127, 0.0
    %v479 = vadd.f32 %v477, %v478
    %v480 = vsel %vm298, %v128, 0.0
    %v481 = vadd.f32 %v479, %v480
    %v482 = vsel %vm298, %v129, 0.0
    %v483 = vadd.f32 %v481, %v482
    %v484 = vsel %vm298, %v130, 0.0
    %v485 = vadd.f32 %v483, %v484
    %v486 = vsel %vm298, %v131, 0.0
    %v487 = vadd.f32 %v485, %v486
    %v488 = vsel %vm298, %v132, 0.0
    %v489 = vadd.f32 %v487, %v488
    %v490 = vsel %vm298, %v133, 0.0
    %v491 = vadd.f32 %v489, %v490
    %v492 = vsel %vm298, %v134, 0.0
    %v493 = vadd.f32 %v491, %v492
    %v494 = vsel %vm298, %v135, 0.0
    %v495 = vadd.f32 %v493, %v494
    %v496 = vsel %vm298, %v136, 0.0
    %v497 = vadd.f32 %v495, %v496
    %v498 = vsel %vm298, %v137, 0.0
    %v499 = vadd.f32 %v497, %v498
    %v500 = vrot.slane %v499, 4
    %v501 = vadd.f32 %v499, %v500
    %v502 = vrot.slane %v501, 2
    %v503 = vadd.f32 %v501, %v502
    %v504 = vrot.slane %v503, 1
    %v505 = vadd.f32 %v503, %v504
    %v506 = vsel %vm298, %v138, 0.0
    %v507 = vsel %vm298, %v139, 0.0
    %v508 = vadd.f32 %v506, %v507
    %v509 = vsel %vm298, %v140, 0.0
    %v510 = vadd.f32 %v508, %v509
    %v511 = vsel %vm298, %v141, 0.0
    %v512 = vadd.f32 %v510, %v511
    %v513 = vsel %vm298, %v142, 0.0
    %v514 = vadd.f32 %v512, %v513
    %v515 = vsel %vm298, %v143, 0.0
    %v516 = vadd.f32 %v514, %v515
    %v517 = vsel %vm298, %v144, 0.0
    %v518 = vadd.f32 %v516, %v517
    %v519 = vsel %vm298, %v145, 0.0
    %v520 = vadd.f32 %v518, %v519
    %v521 = vsel %vm298, %v146, 0.0
    %v522 = vadd.f32 %v520, %v521
    %v523 = vsel %vm298, %v147, 0.0
    %v524 = vadd.f32 %v522, %v523
    %v525 = vsel %vm298, %v148, 0.0
    %v526 = vadd.f32 %v524, %v525
    %v527 = vsel %vm298, %v149, 0.0
    %v528 = vadd.f32 %v526, %v527
    %v529 = vsel %vm298, %v150, 0.0
    %v530 = vadd.f32 %v528, %v529
    %v531 = vsel %vm298, %v151, 0.0
    %v532 = vadd.f32 %v530, %v531
    %v533 = vsel %vm298, %v152, 0.0
    %v534 = vadd.f32 %v532, %v533
    %v535 = vsel %vm298, %v153, 0.0
    %v536 = vadd.f32 %v534, %v535
    %v537 = vsel %vm298, %v154, 0.0
    %v538 = vadd.f32 %v536, %v537
    %v539 = vsel %vm298, %v155, 0.0
    %v540 = vadd.f32 %v538, %v539
    %v541 = vsel %vm298, %v156, 0.0
    %v542 = vadd.f32 %v540, %v541
    %v543 = vsel %vm298, %v157, 0.0
    %v544 = vadd.f32 %v542, %v543
    %v545 = vsel %vm298, %v158, 0.0
    %v546 = vadd.f32 %v544, %v545
    %v547 = vsel %vm298, %v159, 0.0
    %v548 = vadd.f32 %v546, %v547
    %v549 = vsel %vm298, %v160, 0.0
    %v550 = vadd.f32 %v548, %v549
    %v551 = vsel %vm298, %v161, 0.0
    %v552 = vadd.f32 %v550, %v551
    %v553 = vsel %vm298, %v162, 0.0
    %v554 = vadd.f32 %v552, %v553
    %v555 = vsel %vm298, %v163, 0.0
    %v556 = vadd.f32 %v554, %v555
    %v557 = vsel %vm298, %v164, 0.0
    %v558 = vadd.f32 %v556, %v557
    %v559 = vsel %vm298, %v165, 0.0
    %v560 = vadd.f32 %v558, %v559
    %v561 = vsel %vm298, %v166, 0.0
    %v562 = vadd.f32 %v560, %v561
    %v563 = vsel %vm298, %v167, 0.0
    %v564 = vadd.f32 %v562, %v563
    %v565 = vsel %vm298, %v168, 0.0
    %v566 = vadd.f32 %v564, %v565
    %v567 = vsel %vm298, %v169, 0.0
    %v568 = vadd.f32 %v566, %v567
    %v569 = vrot.slane %v568, 4
    %v570 = vadd.f32 %v568, %v569
    %v571 = vrot.slane %v570, 2
    %v572 = vadd.f32 %v570, %v571
    %v573 = vrot.slane %v572, 1
    %v574 = vadd.f32 %v572, %v573
    %v575 = vsel %vm298, %v170, 0.0
    %v576 = vsel %vm298, %v171, 0.0
    %v577 = vadd.f32 %v575, %v576
    %v578 = vsel %vm298, %v172, 0.0
    %v579 = vadd.f32 %v577, %v578
    %v580 = vsel %vm298, %v173, 0.0
    %v581 = vadd.f32 %v579, %v580
    %v582 = vsel %vm298, %v174, 0.0
    %v583 = vadd.f32 %v581, %v582
    %v584 = vsel %vm298, %v175, 0.0
    %v585 = vadd.f32 %v583, %v584
    %v586 = vsel %vm298, %v176, 0.0
    %v587 = vadd.f32 %v585, %v586
    %v588 = vsel %vm298, %v177, 0.0
    %v589 = vadd.f32 %v587, %v588
    %v590 = vsel %vm298, %v178, 0.0
    %v591 = vadd.f32 %v589, %v590
    %v592 = vsel %vm298, %v179, 0.0
    %v593 = vadd.f32 %v591, %v592
    %v594 = vsel %vm298, %v180, 0.0
    %v595 = vadd.f32 %v593, %v594
    %v596 = vsel %vm298, %v181, 0.0
    %v597 = vadd.f32 %v595, %v596
    %v598 = vsel %vm298, %v182, 0.0
    %v599 = vadd.f32 %v597, %v598
    %v600 = vsel %vm298, %v183, 0.0
    %v601 = vadd.f32 %v599, %v600
    %v602 = vsel %vm298, %v184, 0.0
    %v603 = vadd.f32 %v601, %v602
    %v604 = vsel %vm298, %v185, 0.0
    %v605 = vadd.f32 %v603, %v604
    %v606 = vsel %vm298, %v186, 0.0
    %v607 = vadd.f32 %v605, %v606
    %v608 = vsel %vm298, %v187, 0.0
    %v609 = vadd.f32 %v607, %v608
    %v610 = vsel %vm298, %v188, 0.0
    %v611 = vadd.f32 %v609, %v610
    %v612 = vsel %vm298, %v189, 0.0
    %v613 = vadd.f32 %v611, %v612
    %v614 = vsel %vm298, %v190, 0.0
    %v615 = vadd.f32 %v613, %v614
    %v616 = vsel %vm298, %v191, 0.0
    %v617 = vadd.f32 %v615, %v616
    %v618 = vsel %vm298, %v192, 0.0
    %v619 = vadd.f32 %v617, %v618
    %v620 = vsel %vm298, %v193, 0.0
    %v621 = vadd.f32 %v619, %v620
    %v622 = vsel %vm298, %v194, 0.0
    %v623 = vadd.f32 %v621, %v622
    %v624 = vsel %vm298, %v195, 0.0
    %v625 = vadd.f32 %v623, %v624
    %v626 = vsel %vm298, %v196, 0.0
    %v627 = vadd.f32 %v625, %v626
    %v628 = vsel %vm298, %v197, 0.0
    %v629 = vadd.f32 %v627, %v628
    %v630 = vsel %vm298, %v198, 0.0
    %v631 = vadd.f32 %v629, %v630
    %v632 = vsel %vm298, %v199, 0.0
    %v633 = vadd.f32 %v631, %v632
    %v634 = vsel %vm298, %v200, 0.0
    %v635 = vadd.f32 %v633, %v634
    %v636 = vsel %vm298, %v201, 0.0
    %v637 = vadd.f32 %v635, %v636
    %v638 = vrot.slane %v637, 4
    %v639 = vadd.f32 %v637, %v638
    %v640 = vrot.slane %v639, 2
    %v641 = vadd.f32 %v639, %v640
    %v642 = vrot.slane %v641, 1
    %v643 = vadd.f32 %v641, %v642
    %v644 = vsel %vm298, %v202, 0.0
    %v645 = vsel %vm298, %v203, 0.0
    %v646 = vadd.f32 %v644, %v645
    %v647 = vsel %vm298, %v204, 0.0
    %v648 = vadd.f32 %v646, %v647
    %v649 = vsel %vm298, %v205, 0.0
    %v650 = vadd.f32 %v648, %v649
    %v651 = vsel %vm298, %v206, 0.0
    %v652 = vadd.f32 %v650, %v651
    %v653 = vsel %vm298, %v207, 0.0
    %v654 = vadd.f32 %v652, %v653
    %v655 = vsel %vm298, %v208, 0.0
    %v656 = vadd.f32 %v654, %v655
    %v657 = vsel %vm298, %v209, 0.0
    %v658 = vadd.f32 %v656, %v657
    %v659 = vsel %vm298, %v210, 0.0
    %v660 = vadd.f32 %v658, %v659
    %v661 = vsel %vm298, %v211, 0.0
    %v662 = vadd.f32 %v660, %v661
    %v663 = vsel %vm298, %v212, 0.0
    %v664 = vadd.f32 %v662, %v663
    %v665 = vsel %vm298, %v213, 0.0
    %v666 = vadd.f32 %v664, %v665
    %v667 = vsel %vm298, %v214, 0.0
    %v668 = vadd.f32 %v666, %v667
    %v669 = vsel %vm298, %v215, 0.0
    %v670 = vadd.f32 %v668, %v669
    %v671 = vsel %vm298, %v216, 0.0
    %v672 = vadd.f32 %v670, %v671
    %v673 = vsel %vm298, %v217, 0.0
    %v674 = vadd.f32 %v672, %v673
    %v675 = vsel %vm298, %v218, 0.0
    %v676 = vadd.f32 %v674, %v675
    %v677 = vsel %vm298, %v219, 0.0
    %v678 = vadd.f32 %v676, %v677
    %v679 = vsel %vm298, %v220, 0.0
    %v680 = vadd.f32 %v678, %v679
    %v681 = vsel %vm298, %v221, 0.0
    %v682 = vadd.f32 %v680, %v681
    %v683 = vsel %vm298, %v222, 0.0
    %v684 = vadd.f32 %v682, %v683
    %v685 = vsel %vm298, %v223, 0.0
    %v686 = vadd.f32 %v684, %v685
    %v687 = vsel %vm298, %v224, 0.0
    %v688 = vadd.f32 %v686, %v687
    %v689 = vsel %vm298, %v225, 0.0
    %v690 = vadd.f32 %v688, %v689
    %v691 = vsel %vm298, %v226, 0.0
    %v692 = vadd.f32 %v690, %v691
    %v693 = vsel %vm298, %v227, 0.0
    %v694 = vadd.f32 %v692, %v693
    %v695 = vsel %vm298, %v228, 0.0
    %v696 = vadd.f32 %v694, %v695
    %v697 = vsel %vm298, %v229, 0.0
    %v698 = vadd.f32 %v696, %v697
    %v699 = vsel %vm298, %v230, 0.0
    %v700 = vadd.f32 %v698, %v699
    %v701 = vsel %vm298, %v231, 0.0
    %v702 = vadd.f32 %v700, %v701
    %v703 = vsel %vm298, %v232, 0.0
    %v704 = vadd.f32 %v702, %v703
    %v705 = vsel %vm298, %v233, 0.0
    %v706 = vadd.f32 %v704, %v705
    %v707 = vrot.slane %v706, 4
    %v708 = vadd.f32 %v706, %v707
    %v709 = vrot.slane %v708, 2
    %v710 = vadd.f32 %v708, %v709
    %v711 = vrot.slane %v710, 1
    %v712 = vadd.f32 %v710, %v711
    %v713 = vsel %vm298, %v234, 0.0
    %v714 = vsel %vm298, %v235, 0.0
    %v715 = vadd.f32 %v713, %v714
    %v716 = vsel %vm298, %v236, 0.0
    %v717 = vadd.f32 %v715, %v716
    %v718 = vsel %vm298, %v237, 0.0
    %v719 = vadd.f32 %v717, %v718
    %v720 = vsel %vm298, %v238, 0.0
    %v721 = vadd.f32 %v719, %v720
    %v722 = vsel %vm298, %v239, 0.0
    %v723 = vadd.f32 %v721, %v722
    %v724 = vsel %vm298, %v240, 0.0
    %v725 = vadd.f32 %v723, %v724
    %v726 = vsel %vm298, %v241, 0.0
    %v727 = vadd.f32 %v725, %v726
    %v728 = vsel %vm298, %v242, 0.0
    %v729 = vadd.f32 %v727, %v728
    %v730 = vsel %vm298, %v243, 0.0
    %v731 = vadd.f32 %v729, %v730
    %v732 = vsel %vm298, %v244, 0.0
    %v733 = vadd.f32 %v731, %v732
    %v734 = vsel %vm298, %v245, 0.0
    %v735 = vadd.f32 %v733, %v734
    %v736 = vsel %vm298, %v246, 0.0
    %v737 = vadd.f32 %v735, %v736
    %v738 = vsel %vm298, %v247, 0.0
    %v739 = vadd.f32 %v737, %v738
    %v740 = vsel %vm298, %v248, 0.0
    %v741 = vadd.f32 %v739, %v740
    %v742 = vsel %vm298, %v249, 0.0
    %v743 = vadd.f32 %v741, %v742
    %v744 = vsel %vm298, %v250, 0.0
    %v745 = vadd.f32 %v743, %v744
    %v746 = vsel %vm298, %v251, 0.0
    %v747 = vadd.f32 %v745, %v746
    %v748 = vsel %vm298, %v252, 0.0
    %v749 = vadd.f32 %v747, %v748
    %v750 = vsel %vm298, %v253, 0.0
    %v751 = vadd.f32 %v749, %v750
    %v752 = vsel %vm298, %v254, 0.0
    %v753 = vadd.f32 %v751, %v752
    %v754 = vsel %vm298, %v255, 0.0
    %v755 = vadd.f32 %v753, %v754
    %v756 = vsel %vm298, %v256, 0.0
    %v757 = vadd.f32 %v755, %v756
    %v758 = vsel %vm298, %v257, 0.0
    %v759 = vadd.f32 %v757, %v758
    %v760 = vsel %vm298, %v258, 0.0
    %v761 = vadd.f32 %v759, %v760
    %v762 = vsel %vm298, %v259, 0.0
    %v763 = vadd.f32 %v761, %v762
    %v764 = vsel %vm298, %v260, 0.0
    %v765 = vadd.f32 %v763, %v764
    %v766 = vsel %vm298, %v261, 0.0
    %v767 = vadd.f32 %v765, %v766
    %v768 = vsel %vm298, %v262, 0.0
    %v769 = vadd.f32 %v767, %v768
    %v770 = vsel %vm298, %v263, 0.0
    %v771 = vadd.f32 %v769, %v770
    %v772 = vsel %vm298, %v264, 0.0
    %v773 = vadd.f32 %v771, %v772
    %v774 = vsel %vm298, %v265, 0.0
    %v775 = vadd.f32 %v773, %v774
    %v776 = vrot.slane %v775, 4
    %v777 = vadd.f32 %v775, %v776
    %v778 = vrot.slane %v777, 2
    %v779 = vadd.f32 %v777, %v778
    %v780 = vrot.slane %v779, 1
    %v781 = vadd.f32 %v779, %v780
    %v782 = vsel %vm298, %v266, 0.0
    %v783 = vsel %vm298, %v267, 0.0
    %v784 = vadd.f32 %v782, %v783
    %v785 = vsel %vm298, %v268, 0.0
    %v786 = vadd.f32 %v784, %v785
    %v787 = vsel %vm298, %v269, 0.0
    %v788 = vadd.f32 %v786, %v787
    %v789 = vsel %vm298, %v270, 0.0
    %v790 = vadd.f32 %v788, %v789
    %v791 = vsel %vm298, %v271, 0.0
    %v792 = vadd.f32 %v790, %v791
    %v793 = vsel %vm298, %v272, 0.0
    %v794 = vadd.f32 %v792, %v793
    %v795 = vsel %vm298, %v273, 0.0
    %v796 = vadd.f32 %v794, %v795
    %v797 = vsel %vm298, %v274, 0.0
    %v798 = vadd.f32 %v796, %v797
    %v799 = vsel %vm298, %v275, 0.0
    %v800 = vadd.f32 %v798, %v799
    %v801 = vsel %vm298, %v276, 0.0
    %v802 = vadd.f32 %v800, %v801
    %v803 = vsel %vm298, %v277, 0.0
    %v804 = vadd.f32 %v802, %v803
    %v805 = vsel %vm298, %v278, 0.0
    %v806 = vadd.f32 %v804, %v805
    %v807 = vsel %vm298, %v279, 0.0
    %v808 = vadd.f32 %v806, %v807
    %v809 = vsel %vm298, %v280, 0.0
    %v810 = vadd.f32 %v808, %v809
    %v811 = vsel %vm298, %v281, 0.0
    %v812 = vadd.f32 %v810, %v811
    %v813 = vsel %vm298, %v282, 0.0
    %v814 = vadd.f32 %v812, %v813
    %v815 = vsel %vm298, %v283, 0.0
    %v816 = vadd.f32 %v814, %v815
    %v817 = vsel %vm298, %v284, 0.0
    %v818 = vadd.f32 %v816, %v817
    %v819 = vsel %vm298, %v285, 0.0
    %v820 = vadd.f32 %v818, %v819
    %v821 = vsel %vm298, %v286, 0.0
    %v822 = vadd.f32 %v820, %v821
    %v823 = vsel %vm298, %v287, 0.0
    %v824 = vadd.f32 %v822, %v823
    %v825 = vsel %vm298, %v288, 0.0
    %v826 = vadd.f32 %v824, %v825
    %v827 = vsel %vm298, %v289, 0.0
    %v828 = vadd.f32 %v826, %v827
    %v829 = vsel %vm298, %v290, 0.0
    %v830 = vadd.f32 %v828, %v829
    %v831 = vsel %vm298, %v291, 0.0
    %v832 = vadd.f32 %v830, %v831
    %v833 = vsel %vm298, %v292, 0.0
    %v834 = vadd.f32 %v832, %v833
    %v835 = vsel %vm298, %v293, 0.0
    %v836 = vadd.f32 %v834, %v835
    %v837 = vsel %vm298, %v294, 0.0
    %v838 = vadd.f32 %v836, %v837
    %v839 = vsel %vm298, %v295, 0.0
    %v840 = vadd.f32 %v838, %v839
    %v841 = vsel %vm298, %v296, 0.0
    %v842 = vadd.f32 %v840, %v841
    %v843 = vsel %vm298, %v297, 0.0
    %v844 = vadd.f32 %v842, %v843
    %v845 = vrot.slane %v844, 4
    %v846 = vadd.f32 %v844, %v845
    %v847 = vrot.slane %v846, 2
    %v848 = vadd.f32 %v846, %v847
    %v849 = vrot.slane %v848, 1
    %v850 = vadd.f32 %v848, %v849
    %v851 = vmul.f32 %v367, 0.00390625
    %v852 = vmul.f32 %v436, 0.00390625
    %v853 = vmul.f32 %v505, 0.00390625
    %v854 = vmul.f32 %v574, 0.00390625
    %v855 = vmul.f32 %v643, 0.00390625
    %v856 = vmul.f32 %v712, 0.00390625
    %v857 = vmul.f32 %v781, 0.00390625
    %v858 = vmul.f32 %v850, 0.00390625
    %v859 = vpack.c.bf16 %v851, %v851
    %v860 = vpack.c.bf16 %v852, %v852
    %v861 = vpack.c.bf16 %v853, %v853
    %v862 = vpack.c.bf16 %v854, %v854
    %v863 = vpack.c.bf16 %v855, %v855
    %v864 = vpack.c.bf16 %v856, %v856
    %v865 = vpack.c.bf16 %v857, %v857
    %v866 = vpack.c.bf16 %v858, %v858
    %v867 = vld [vmem:[%s1] sm:$0xf]
    %v868 = vld [vmem:[%s1 + $0x4] sm:$0xf]
    %v869 = vld [vmem:[%s1 + $0x8] sm:$0xf]
    %v870 = vld [vmem:[%s1 + $0xc] sm:$0xf]
    %v871 = vld [vmem:[%s1 + $0x10] sm:$0xf]
    %v872 = vld [vmem:[%s1 + $0x14] sm:$0xf]
    %v873 = vld [vmem:[%s1 + $0x18] sm:$0xf]
    %v874 = vld [vmem:[%s1 + $0x1c] sm:$0xf]
    %v875 = vld [vmem:[%s2] sm:$0x1]
    %v877 = vperm.slane %v875, 0
    %v887 = vunpack.c.l.b16 %v859
    %v888 = vunpack.c.l.b16 %v860
    %v889 = vunpack.c.l.b16 %v861
    %v890 = vunpack.c.l.b16 %v862
    %v891 = vunpack.c.l.b16 %v863
    %v892 = vunpack.c.l.b16 %v864
    %v893 = vunpack.c.l.b16 %v865
    %v894 = vunpack.c.l.b16 %v866
    %vm895 = vcmask 1041409
    %v896 = vsel %vm895, %v888, %v887
    %vm897 = vcmask 1042434
    %v898 = vsel %vm897, %v889, %v896
    %vm899 = vcmask 1043459
    %v900 = vsel %vm899, %v890, %v898
    %vm901 = vcmask 1044484
    %v902 = vsel %vm901, %v891, %v900
    %vm903 = vcmask 1045509
    %v904 = vsel %vm903, %v892, %v902
    %vm905 = vcmask 1046534
    %v906 = vsel %vm905, %v893, %v904
    %vm907 = vcmask 1047559
    %v908 = vsel %vm907, %v894, %v906
    %v909 = vpack.c.b16 %v908, %v908
    %v918 = vunpack.c.l.b16 %v867
    %v919 = vunpack.c.l.b16 %v868
    %v920 = vunpack.c.l.b16 %v869
    %v921 = vunpack.c.l.b16 %v870
    %v922 = vunpack.c.l.b16 %v871
    %v923 = vunpack.c.l.b16 %v872
    %v924 = vunpack.c.l.b16 %v873
    %v925 = vunpack.c.l.b16 %v874
    %v926 = vpack.c.b16 %v919, %v918
    %v927 = vpack.c.b16 %v921, %v920
    %v928 = vpack.c.b16 %v923, %v922
    %v929 = vpack.c.b16 %v925, %v924
    %v935 = vsel %vm298, %v909, 0
    %937 = vmatpush.bf16.msra.mxu0 0
    %938 = vmatpush.bf16.msra.mxu0 0
    %939 = vmatpush.bf16.msra.mxu0 0
    %940 = vmatpush.bf16.msra.mxu0 0
    %941 = vmatpush.bf16.msra.mxu0 %v929
    %942 = vmatpush.bf16.msra.mxu0 %v928
    %943 = vmatpush.bf16.msra.mxu0 %v927
    %944 = vmatpush.bf16.msra.mxu0 %v926
    %945 = vmatmul.bf16.gmra.mxu0 %v935
    %v946 = vpop.f32.mrf.mxu0
    %v947 = vadd.f32 %v877, %v946
    %v948 = vpop.f32.mrf.mxu0
    %949 = vdwg.mxu0
    %v950 = vmax.f32 %v947, 0.0
    %951 = vst [vmem:[#allocation3] sm:$0xff] %v950
    %v952 = vpack.c.bf16 %v950, %v950
    %v953 = vld [vmem:[%s3] sm:$0xff]
    %v954 = vld [vmem:[%s3 + $0x8] sm:$0xff]
    %v955 = vld [vmem:[%s3 + $0x10] sm:$0xff]
    %v956 = vld [vmem:[%s3 + $0x18] sm:$0xff]
    %v957 = vld [vmem:[%s3 + $0x20] sm:$0xff]
    %v958 = vld [vmem:[%s3 + $0x28] sm:$0xff]
    %v959 = vld [vmem:[%s3 + $0x30] sm:$0xff]
    %v960 = vld [vmem:[%s3 + $0x38] sm:$0xff]
    %v961 = vld [vmem:[%s3 + $0x40] sm:$0xff]
    %v962 = vld [vmem:[%s3 + $0x48] sm:$0xff]
    %v963 = vld [vmem:[%s3 + $0x50] sm:$0xff]
    %v964 = vld [vmem:[%s3 + $0x58] sm:$0xff]
    %v965 = vld [vmem:[%s3 + $0x60] sm:$0xff]
    %v966 = vld [vmem:[%s3 + $0x68] sm:$0xff]
    %v967 = vld [vmem:[%s3 + $0x70] sm:$0xff]
    %v968 = vld [vmem:[%s3 + $0x78] sm:$0xff]
    %v969 = vld [vmem:[%s4] sm:$0x3]
    %v971 = vperm.slane %v969, 0
    %v972 = vperm.slane %v969, 1
    %v991 = vunpack.c.l.b16 %v953
    %v992 = vunpack.c.h.b16 %v953
    %v993 = vunpack.c.l.b16 %v954
    %v994 = vunpack.c.h.b16 %v954
    %v995 = vunpack.c.l.b16 %v955
    %v996 = vunpack.c.h.b16 %v955
    %v997 = vunpack.c.l.b16 %v956
    %v998 = vunpack.c.h.b16 %v956
    %v999 = vunpack.c.l.b16 %v957
    %v1000 = vunpack.c.h.b16 %v957
    %v1001 = vunpack.c.l.b16 %v958
    %v1002 = vunpack.c.h.b16 %v958
    %v1003 = vunpack.c.l.b16 %v959
    %v1004 = vunpack.c.h.b16 %v959
    %v1005 = vunpack.c.l.b16 %v960
    %v1006 = vunpack.c.h.b16 %v960
    %v1007 = vunpack.c.l.b16 %v961
    %v1008 = vunpack.c.h.b16 %v961
    %v1009 = vunpack.c.l.b16 %v962
    %v1010 = vunpack.c.h.b16 %v962
    %v1011 = vunpack.c.l.b16 %v963
    %v1012 = vunpack.c.h.b16 %v963
    %v1013 = vunpack.c.l.b16 %v964
    %v1014 = vunpack.c.h.b16 %v964
    %v1015 = vunpack.c.l.b16 %v965
    %v1016 = vunpack.c.h.b16 %v965
    %v1017 = vunpack.c.l.b16 %v966
    %v1018 = vunpack.c.h.b16 %v966
    %v1019 = vunpack.c.l.b16 %v967
    %v1020 = vunpack.c.h.b16 %v967
    %v1021 = vunpack.c.l.b16 %v968
    %v1022 = vunpack.c.h.b16 %v968
    %v1023 = vpack.c.b16 %v993, %v991
    %v1024 = vpack.c.b16 %v994, %v992
    %v1025 = vpack.c.b16 %v997, %v995
    %v1026 = vpack.c.b16 %v998, %v996
    %v1027 = vpack.c.b16 %v1001, %v999
    %v1028 = vpack.c.b16 %v1002, %v1000
    %v1029 = vpack.c.b16 %v1005, %v1003
    %v1030 = vpack.c.b16 %v1006, %v1004
    %v1031 = vpack.c.b16 %v1009, %v1007
    %v1032 = vpack.c.b16 %v1010, %v1008
    %v1033 = vpack.c.b16 %v1013, %v1011
    %v1034 = vpack.c.b16 %v1014, %v1012
    %v1035 = vpack.c.b16 %v1017, %v1015
    %v1036 = vpack.c.b16 %v1018, %v1016
    %v1037 = vpack.c.b16 %v1021, %v1019
    %v1038 = vpack.c.b16 %v1022, %v1020
    %1055 = vmatpush.bf16.msra.mxu0 %v1037
    %1056 = vmatpush.bf16.msra.mxu0 %v1035
    %1057 = vmatpush.bf16.msra.mxu0 %v1033
    %1058 = vmatpush.bf16.msra.mxu0 %v1031
    %1059 = vmatpush.bf16.msra.mxu0 %v1029
    %1060 = vmatpush.bf16.msra.mxu0 %v1027
    %1061 = vmatpush.bf16.msra.mxu0 %v1025
    %1062 = vmatpush.bf16.msra.mxu0 %v1023
    %1063 = vmatmul.bf16.gmra.mxu0 %v952
    %v1064 = vpop.f32.mrf.mxu0
    %v1065 = vadd.f32 %v971, %v1064
    %v1066 = vpop.f32.mrf.mxu0
    %1067 = vdwg.mxu0
    %1068 = vmatpush.bf16.msra.mxu0 %v1038
    %1069 = vmatpush.bf16.msra.mxu0 %v1036
    %1070 = vmatpush.bf16.msra.mxu0 %v1034
    %1071 = vmatpush.bf16.msra.mxu0 %v1032
    %1072 = vmatpush.bf16.msra.mxu0 %v1030
    %1073 = vmatpush.bf16.msra.mxu0 %v1028
    %1074 = vmatpush.bf16.msra.mxu0 %v1026
    %1075 = vmatpush.bf16.msra.mxu0 %v1024
    %1076 = vmatmul.bf16.gmra.mxu0 %v952
    %v1077 = vpop.f32.mrf.mxu0
    %v1078 = vadd.f32 %v972, %v1077
    %v1079 = vpop.f32.mrf.mxu0
    %1080 = vdwg.mxu0
    %v1081 = vmax.f32 %v1078, 0.0
    %1082 = vst [vmem:[#allocation5] sm:$0xff] %v1065
    %v1083 = vlaneseq
    %v1084 = vand.u32 %v1083, 127
    %vm1085 = vcmp.lt.s32.totalorder %v1084, 8
    %v1086 = vsel %vm1085, %v1065, -inf
    %1087 = vmax.xlane.f32.xlu0 %v1086
    %v1088 = vpop.xlane.xlu0 %1087
    %v1089 = vsub.f32 %v1086, %v1088
    %v1090 = vmul.f32 %v1089, 1.442695
    %v1091 = vpow.pop %v1090
    %1092 = vadd.xlane.f32.xlu0 %v1091
    %v1093 = vpop.xlane.xlu0 %1092
    %v1094 = vrcp.pop %v1093
    %v1095 = vmul.f32 %v1091, %v1094
    %1096 = vst [vmem:[#allocation7] sm:$0xff] %v1095
    %v1097 = vpack.c.bf16 %v1081, %v1081
    %v1098 = vld [vmem:[%s5] sm:$0xf]
    %v1099 = vld [vmem:[%s5 + $0x4] sm:$0xf]
    %v1100 = vld [vmem:[%s5 + $0x8] sm:$0xf]
    %v1101 = vld [vmem:[%s5 + $0xc] sm:$0xf]
    %v1102 = vld [vmem:[%s5 + $0x10] sm:$0xf]
    %v1103 = vld [vmem:[%s5 + $0x14] sm:$0xf]
    %v1104 = vld [vmem:[%s5 + $0x18] sm:$0xf]
    %v1105 = vld [vmem:[%s5 + $0x1c] sm:$0xf]
    %v1106 = vld [vmem:[%s5 + $0x20] sm:$0xf]
    %v1107 = vld [vmem:[%s5 + $0x24] sm:$0xf]
    %v1108 = vld [vmem:[%s5 + $0x28] sm:$0xf]
    %v1109 = vld [vmem:[%s5 + $0x2c] sm:$0xf]
    %v1110 = vld [vmem:[%s5 + $0x30] sm:$0xf]
    %v1111 = vld [vmem:[%s5 + $0x34] sm:$0xf]
    %v1112 = vld [vmem:[%s5 + $0x38] sm:$0xf]
    %v1113 = vld [vmem:[%s5 + $0x3c] sm:$0xf]
    %v1114 = vld [vmem:[%s6] sm:$0x1]
    %v1116 = vperm.slane %v1114, 0
    %v1134 = vunpack.c.l.b16 %v1098
    %v1135 = vunpack.c.l.b16 %v1099
    %v1136 = vunpack.c.l.b16 %v1100
    %v1137 = vunpack.c.l.b16 %v1101
    %v1138 = vunpack.c.l.b16 %v1102
    %v1139 = vunpack.c.l.b16 %v1103
    %v1140 = vunpack.c.l.b16 %v1104
    %v1141 = vunpack.c.l.b16 %v1105
    %v1142 = vunpack.c.l.b16 %v1106
    %v1143 = vunpack.c.l.b16 %v1107
    %v1144 = vunpack.c.l.b16 %v1108
    %v1145 = vunpack.c.l.b16 %v1109
    %v1146 = vunpack.c.l.b16 %v1110
    %v1147 = vunpack.c.l.b16 %v1111
    %v1148 = vunpack.c.l.b16 %v1112
    %v1149 = vunpack.c.l.b16 %v1113
    %v1150 = vpack.c.b16 %v1135, %v1134
    %v1151 = vpack.c.b16 %v1137, %v1136
    %v1152 = vpack.c.b16 %v1139, %v1138
    %v1153 = vpack.c.b16 %v1141, %v1140
    %v1154 = vpack.c.b16 %v1143, %v1142
    %v1155 = vpack.c.b16 %v1145, %v1144
    %v1156 = vpack.c.b16 %v1147, %v1146
    %v1157 = vpack.c.b16 %v1149, %v1148
    %1166 = vmatpush.bf16.msra.mxu0 %v1157
    %1167 = vmatpush.bf16.msra.mxu0 %v1156
    %1168 = vmatpush.bf16.msra.mxu0 %v1155
    %1169 = vmatpush.bf16.msra.mxu0 %v1154
    %1170 = vmatpush.bf16.msra.mxu0 %v1153
    %1171 = vmatpush.bf16.msra.mxu0 %v1152
    %1172 = vmatpush.bf16.msra.mxu0 %v1151
    %1173 = vmatpush.bf16.msra.mxu0 %v1150
    %1174 = vmatmul.bf16.gmra.mxu0 %v1097
    %v1175 = vpop.f32.mrf.mxu0
    %v1176 = vadd.f32 %v1116, %v1175
    %v1177 = vpop.f32.mrf.mxu0
    %1178 = vdwg.mxu0
    %v1179 = vmax.f32 %v1176, 0.0
    %v1180 = vld [vmem:[%s7] sm:$0x1]
    %v1182 = vperm.slane %v1180, 0
    %v1184 = vmul.f32 %v1179, %v1182
    %1185 = vadd.xlane.f32.xlu0 %v1184
    %v1186 = vpop.xlane.xlu0 %1185
    %v1187 = vld [vmem:[#allocation2] sm:$0x1]
    %v1189 = vperm.slane %v1187, 0
    %v1191 = vadd.f32 %v1186, %v1189
    %v1192 = vsub.f32 0.0, %v1191
    %v1193 = vmul.f32 %v1192, 1.442695
    %v1194 = vpow.pop %v1193
    %v1195 = vadd.f32 %v1194, 1.0
    %v1196 = vrcp.pop %v1195
    %1198 = vset.pattern.permute.xlu0 0
    %1199 = vperm.xlu0 %1198, %v1196
    %v1200 = vpop.permute.xlu0 %1199
    %1202 = vst [vmem:[#allocation8] sm:$0xff] %v1200
    // Predicated region
    $region38: #{tpu_custom_call.1} parent=1 // pred_check
      _
    $region39: #{tpu_custom_call.1} parent=1 // pred_check_branch
      %1204 = sbr.rel (0) target = $region41
    $region40: #{tpu_custom_call.1} parent=1 // pred_region
      %1206 = vsyncadd [#allocation4], 0
      %s1208 = sshll.u32 [#allocation3], 4
      %s1209 = int_to_ptr.vmem [resolvable:$true] %s1208
      %s1210 = sshll.u32 %s9, 4
      %s1211 = int_to_ptr.hbm [resolvable:$true] %s1210
      %1213 = dma.vmem_to_hbm [thread:$0]  %s1209, 128, %s1211, [#allocation4]
    $region41: #{tpu_custom_call.1} parent=1 // pred_fallthru
      _
    // Predicated region
    $region42: #{tpu_custom_call.1} parent=1 // pred_check
      _
    $region43: #{tpu_custom_call.1} parent=1 // pred_check_branch
      %1215 = sbr.rel (0) target = $region45
    $region44: #{tpu_custom_call.1} parent=1 // pred_region
      %1217 = vsyncadd [#allocation6], 0
      %s1219 = sshll.u32 [#allocation5], 4
      %s1220 = int_to_ptr.vmem [resolvable:$true] %s1219
      %s1221 = sshll.u32 %s10, 4
      %s1222 = int_to_ptr.hbm [resolvable:$true] %s1221
      %1224 = dma.vmem_to_hbm [thread:$0]  %s1220, 128, %s1222, [#allocation6]
    $region45: #{tpu_custom_call.1} parent=1 // pred_fallthru
      _
    // Predicated region
    $region46: #{tpu_custom_call.1} parent=1 // pred_check
      _
    $region47: #{tpu_custom_call.1} parent=1 // pred_check_branch
      %1226 = sbr.rel (0) target = $region49
    $region48: #{tpu_custom_call.1} parent=1 // pred_region
      %1228 = vsyncadd [#allocation6], 0
      %s1230 = sshll.u32 [#allocation7], 4
      %s1231 = int_to_ptr.vmem [resolvable:$true] %s1230
      %s1232 = sshll.u32 %s11, 4
      %s1233 = int_to_ptr.hbm [resolvable:$true] %s1232
      %1235 = dma.vmem_to_hbm [thread:$0]  %s1231, 128, %s1233, [#allocation6]
    $region49: #{tpu_custom_call.1} parent=1 // pred_fallthru
      _
    // Predicated region
    $region50: #{tpu_custom_call.1} parent=1 // pred_check
      _
    $region51: #{tpu_custom_call.1} parent=1 // pred_check_branch
      %1237 = sbr.rel (0) target = $region53
    $region52: #{tpu_custom_call.1} parent=1 // pred_region
      %1239 = vsyncadd [#allocation9], 0
      %s1241 = sshll.u32 [#allocation8], 4
      %s1242 = int_to_ptr.vmem [resolvable:$true] %s1241
      %s1243 = sshll.u32 %s12, 4
      %s1244 = int_to_ptr.hbm [resolvable:$true] %s1243
      %1246 = dma.vmem_to_hbm [thread:$0]  %s1242, 128, %s1244, [#allocation9]
    $region53: #{tpu_custom_call.1} parent=1 // pred_fallthru
      _
    // Predicated region
    $region54: #{tpu_custom_call.1} parent=1 // pred_check
      _
    $region55: #{tpu_custom_call.1} parent=1 // pred_check_branch
      %1248 = sbr.rel (0) target = $region57
    $region56: #{tpu_custom_call.1} parent=1 // pred_region
      %1250 = dma.done [#allocation4], 128
    $region57: #{tpu_custom_call.1} parent=1 // pred_fallthru
      _
    // Predicated region
    $region58: #{tpu_custom_call.1} parent=1 // pred_check
      _
    $region59: #{tpu_custom_call.1} parent=1 // pred_check_branch
      %1252 = sbr.rel (0) target = $region61
    $region60: #{tpu_custom_call.1} parent=1 // pred_region
      %1254 = dma.done [#allocation6], 128
    $region61: #{tpu_custom_call.1} parent=1 // pred_fallthru
      _
    // Predicated region
    $region62: #{tpu_custom_call.1} parent=1 // pred_check
      _
    $region63: #{tpu_custom_call.1} parent=1 // pred_check_branch
      %1256 = sbr.rel (0) target = $region65
    $region64: #{tpu_custom_call.1} parent=1 // pred_region
      %1258 = dma.done [#allocation6], 128
    $region65: #{tpu_custom_call.1} parent=1 // pred_fallthru
      _
    // Predicated region
    $region66: #{tpu_custom_call.1} parent=1 // pred_check
      _
    $region67: #{tpu_custom_call.1} parent=1 // pred_check_branch
      %1260 = sbr.rel (0) target = $region69
    $region68: #{tpu_custom_call.1} parent=1 // pred_region
      %1262 = dma.done [#allocation9], 128
    $region69: #{tpu_custom_call.1} parent=1 // pred_fallthru
      _
    %1263 = vsyncpa [#allocation4], 1
    %1264 = vsyncpa [#allocation6], 1
    %1265 = vsyncpa [#allocation9], 1

</llo_original>
